<compile_context>
chip_gen: v5e
topology: v5e:2x2
jax: 0.10.0
libtpu: 0.0.40
codegen_flags: <defaults>
</compile_context>

<pallas_src>
import functools

import jax
import jax.numpy as jnp
from jax.experimental import pallas as pl
from jax.experimental.pallas import tpu as pltpu


def _round_up(x: int, m: int) -> int:
    return ((x + m - 1) // m) * m


# ----------------------------------------------------------------------------
# Fused kernel: 3x3 conv + bias + ReLU + global-average-pool + linear head.
# Processes one batch element per grid step.
# ----------------------------------------------------------------------------
def fused_conv_pool_head_kernel(
    xp_ref,    # (1, L, Cin_pad)          row-flattened zero-padded image
    mask_ref,  # (Hext, 1)                1.0 on valid extended-output rows
    wc_ref,    # (9, Cin_pad, Cout_pad)   conv taps, tap t = kh*3 + kw
    bc_ref,    # (1, Cout_pad)            conv bias
    wh_ref,    # (Cout_pad, NC_pad)       head weight
    bh_ref,    # (1, NC_pad)              head bias
    o_ref,     # (1, 1, NC_pad)           per-image logits
    *,
    H: int,
    W: int,
):
    Wp = W + 2                 # padded image width
    Hext = H * Wp              # extended output rows (incl. 2 wrap cols / row)
    Cout_pad = wc_ref.shape[-1]

    bc = bc_ref[...]                                # hoisted broadcasts
    w_taps = [wc_ref[t] for t in range(9)]          # (Cin_pad, Cout_pad) each

    # Row-chunked so the f32 intermediate stays bounded in VMEM.
    CHUNK = 2048
    pooled = jnp.zeros((1, Cout_pad), jnp.float32)
    for r0 in range(0, Hext, CHUNK):
        rows = min(CHUNK, Hext - r0)
        acc = jnp.zeros((rows, Cout_pad), jnp.float32)
        # 3x3 conv = 9 accumulating matmuls over contiguous shifted slices of
        # the flattened padded image (no im2col blow-up).
        for kh in range(3):
            for kw in range(3):
                off = r0 + kh * Wp + kw
                x_tap = xp_ref[0, off:off + rows, :]          # (rows, Cin_pad)
                acc = acc + jnp.dot(x_tap, w_taps[kh * 3 + kw],
                                    preferred_element_type=jnp.float32)
        # bias + ReLU (f32 epilogue), mask out wrap-around columns, partial sum.
        acc = jnp.maximum(acc + bc, 0.0) * mask_ref[r0:r0 + rows, :]
        pooled = pooled + jnp.sum(acc, axis=0, keepdims=True)

    pooled = pooled * (1.0 / (H * W))                          # mean pool
    y = jnp.dot(pooled, wh_ref[...], preferred_element_type=jnp.float32)
    y = y + bh_ref[...]
    o_ref[0] = y.astype(o_ref.dtype)


# ----------------------------------------------------------------------------
# Wrapper: layout plumbing only (transpose / zero-pad / weight reshape).
# ----------------------------------------------------------------------------
def custom_model_forward(x_nchw, conv_w, conv_b, head_w, head_b):
    """x: (N, Cin, H, W) NCHW; conv_w: (Cout, Cin, 3, 3); head_w: (Cout, NC)."""
    N, Cin, H, W = x_nchw.shape
    Cout = conv_w.shape[0]
    NC = head_w.shape[1]

    Hp, Wp = H + 2, W + 2
    Hext = H * Wp
    Cin_pad = _round_up(Cin, 8)
    Cout_pad = _round_up(Cout, 128)      # lane-dense MXU operands
    NC_pad = _round_up(NC, 128)          # lane-dense output stores
    # The (kh=2, kw=2) tap slice ends at Hp*Wp + 2; round flat length up to 8.
    L = _round_up(Hp * Wp + 2, 8)

    # NCHW -> NHWC, zero-pad H/W by 1, flatten rows (cheap; no 9x blow-up).
    x = jnp.transpose(x_nchw, (0, 2, 3, 1))
    xp = jnp.pad(x, ((0, 0), (1, 1), (1, 1), (0, 0)))
    xp_flat = xp.reshape(N, Hp * Wp, Cin)
    xp_flat = jnp.pad(xp_flat, ((0, 0), (0, L - Hp * Wp), (0, Cin_pad - Cin)))

    # conv weight (Cout, Cin, 3, 3) -> (9, Cin_pad, Cout_pad); zero pad = exact.
    wc = jnp.transpose(conv_w, (2, 3, 1, 0)).reshape(9, Cin, Cout)
    wc = jnp.pad(wc, ((0, 0), (0, Cin_pad - Cin), (0, Cout_pad - Cout)))
    bc = jnp.pad(conv_b, (0, Cout_pad - Cout)).reshape(1, Cout_pad)
    wh = jnp.pad(head_w, ((0, Cout_pad - Cout), (0, NC_pad - NC)))
    bh = jnp.pad(head_b, (0, NC_pad - NC)).reshape(1, NC_pad)

    # Validity mask over the extended output rows (zeros the 2 wrap columns).
    col = jnp.arange(Hext, dtype=jnp.int32) % Wp
    mask = (col < W).astype(jnp.float32).reshape(Hext, 1)

    kernel = functools.partial(fused_conv_pool_head_kernel, H=H, W=W)

    flops = N * (2 * Hext * 9 * Cin_pad * Cout_pad + 2 * Cout_pad * NC_pad)
    bytes_accessed = 4 * (N * L * Cin_pad + Hext + 9 * Cin_pad * Cout_pad
                          + Cout_pad + Cout_pad * NC_pad + NC_pad + N * NC_pad)

    out = pl.pallas_call(
        kernel,
        out_shape=jax.ShapeDtypeStruct((N, 1, NC_pad), jnp.float32),
        grid=(N,),
        in_specs=[
            pl.BlockSpec((1, L, Cin_pad), lambda n: (n, 0, 0)),
            pl.BlockSpec((Hext, 1), lambda n: (0, 0)),
            pl.BlockSpec((9, Cin_pad, Cout_pad), lambda n: (0, 0, 0)),
            pl.BlockSpec((1, Cout_pad), lambda n: (0, 0)),
            pl.BlockSpec((Cout_pad, NC_pad), lambda n: (0, 0)),
            pl.BlockSpec((1, NC_pad), lambda n: (0, 0)),
        ],
        out_specs=pl.BlockSpec((1, 1, NC_pad), lambda n: (n, 0, 0)),
        compiler_params=pltpu.CompilerParams(
            dimension_semantics=("parallel",)),
        cost_estimate=pl.CostEstimate(
            flops=flops, transcendentals=0, bytes_accessed=bytes_accessed),
    )(xp_flat, mask, wc, bc, wh, bh)

    return out.reshape(N, NC_pad)[:, :NC]


if __name__ == "__main__":
    key = jax.random.PRNGKey(0)
    k_x, k_cw, k_cb, k_hw, k_hb = jax.random.split(key, 5)

    N, Cin, H, W = 2, 4, 16, 16
    Cout, num_classes = 32, 8

    x = jax.random.normal(k_x, (N, Cin, H, W), dtype=jnp.float32)
    conv_w = jax.random.normal(k_cw, (Cout, Cin, 3, 3), dtype=jnp.float32) * 0.1
    conv_b = jax.random.normal(k_cb, (Cout,), dtype=jnp.float32) * 0.1
    head_w = jax.random.normal(k_hw, (Cout, num_classes), dtype=jnp.float32) * 0.1
    head_b = jax.random.normal(k_hb, (num_classes,), dtype=jnp.float32) * 0.1

    forward = jax.jit(custom_model_forward)
    y = forward(x, conv_w, conv_b, head_w, head_b)
    jax.block_until_ready(y)

    # Pure-JAX reference check.
    x_nhwc = jnp.transpose(x, (0, 2, 3, 1))
    f_ref = jax.lax.conv_general_dilated(
        x_nhwc, jnp.transpose(conv_w, (2, 3, 1, 0)),
        window_strides=(1, 1), padding="SAME",
        dimension_numbers=("NHWC", "HWIO", "NHWC"))
    f_ref = jnp.maximum(f_ref + conv_b, 0.0)
    pooled = f_ref.mean(axis=(1, 2))
    y_ref = pooled @ head_w + head_b

    assert y.shape == (N, num_classes), y.shape
    assert jnp.allclose(y, y_ref, atol=1e-4, rtol=1e-4), "mismatch vs reference"
    print("KERNEL_OK")
</pallas_src>

<mosaic_0001>
module attributes {stable_mosaic.version = 11 : i64} {
  func.func @fused_conv_pool_head_kernel(%arg0: i32, %arg1: memref<1x328x8xf32, #tpu.memory_space<vmem>>, %arg2: memref<288x1xf32, #tpu.memory_space<vmem>>, %arg3: memref<9x8x128xf32, #tpu.memory_space<vmem>>, %arg4: memref<1x128xf32, #tpu.memory_space<vmem>>, %arg5: memref<128x128xf32, #tpu.memory_space<vmem>>, %arg6: memref<1x128xf32, #tpu.memory_space<vmem>>, %arg7: memref<1x1x128xf32, #tpu.memory_space<vmem>>) attributes {dimension_semantics = [#tpu.dimension_semantics<parallel>], iteration_bounds = array<i64: 2>, scalar_prefetch = 0 : i64, scratch_operands = 0 : i64, tpu.core_type = #tpu.core_type<tc>, window_params = [{transform_indices = @transform_0, window_bounds = array<i64: 1, 328, 8>}, {pipeline_mode = #tpu.pipeline_mode<synchronous>, transform_indices = @transform_1, window_bounds = array<i64: 288, 1>}, {pipeline_mode = #tpu.pipeline_mode<synchronous>, transform_indices = @transform_2, window_bounds = array<i64: 9, 8, 128>}, {pipeline_mode = #tpu.pipeline_mode<synchronous>, transform_indices = @transform_3, window_bounds = array<i64: 1, 128>}, {pipeline_mode = #tpu.pipeline_mode<synchronous>, transform_indices = @transform_4, window_bounds = array<i64: 128, 128>}, {pipeline_mode = #tpu.pipeline_mode<synchronous>, transform_indices = @transform_5, window_bounds = array<i64: 1, 128>}, {transform_indices = @transform_6, window_bounds = array<i64: 1, 1, 128>}]} {
    %c0 = arith.constant 0 : index
    %c0_0 = arith.constant 0 : index
    %0 = vector.load %arg4[%c0, %c0_0] : memref<1x128xf32, #tpu.memory_space<vmem>>, vector<1x128xf32>
    %c0_1 = arith.constant 0 : index
    %c0_2 = arith.constant 0 : index
    %c0_3 = arith.constant 0 : index
    %1 = vector.load %arg3[%c0_1, %c0_2, %c0_3] : memref<9x8x128xf32, #tpu.memory_space<vmem>>, vector<1x8x128xf32>
    %2 = vector.shape_cast %1 : vector<1x8x128xf32> to vector<8x128xf32>
    %c1 = arith.constant 1 : index
    %c0_4 = arith.constant 0 : index
    %c0_5 = arith.constant 0 : index
    %3 = vector.load %arg3[%c1, %c0_4, %c0_5] : memref<9x8x128xf32, #tpu.memory_space<vmem>>, vector<1x8x128xf32>
    %4 = vector.shape_cast %3 : vector<1x8x128xf32> to vector<8x128xf32>
    %c2 = arith.constant 2 : index
    %c0_6 = arith.constant 0 : index
    %c0_7 = arith.constant 0 : index
    %5 = vector.load %arg3[%c2, %c0_6, %c0_7] : memref<9x8x128xf32, #tpu.memory_space<vmem>>, vector<1x8x128xf32>
    %6 = vector.shape_cast %5 : vector<1x8x128xf32> to vector<8x128xf32>
    %c3 = arith.constant 3 : index
    %c0_8 = arith.constant 0 : index
    %c0_9 = arith.constant 0 : index
    %7 = vector.load %arg3[%c3, %c0_8, %c0_9] : memref<9x8x128xf32, #tpu.memory_space<vmem>>, vector<1x8x128xf32>
    %8 = vector.shape_cast %7 : vector<1x8x128xf32> to vector<8x128xf32>
    %c4 = arith.constant 4 : index
    %c0_10 = arith.constant 0 : index
    %c0_11 = arith.constant 0 : index
    %9 = vector.load %arg3[%c4, %c0_10, %c0_11] : memref<9x8x128xf32, #tpu.memory_space<vmem>>, vector<1x8x128xf32>
    %10 = vector.shape_cast %9 : vector<1x8x128xf32> to vector<8x128xf32>
    %c5 = arith.constant 5 : index
    %c0_12 = arith.constant 0 : index
    %c0_13 = arith.constant 0 : index
    %11 = vector.load %arg3[%c5, %c0_12, %c0_13] : memref<9x8x128xf32, #tpu.memory_space<vmem>>, vector<1x8x128xf32>
    %12 = vector.shape_cast %11 : vector<1x8x128xf32> to vector<8x128xf32>
    %c6 = arith.constant 6 : index
    %c0_14 = arith.constant 0 : index
    %c0_15 = arith.constant 0 : index
    %13 = vector.load %arg3[%c6, %c0_14, %c0_15] : memref<9x8x128xf32, #tpu.memory_space<vmem>>, vector<1x8x128xf32>
    %14 = vector.shape_cast %13 : vector<1x8x128xf32> to vector<8x128xf32>
    %c7 = arith.constant 7 : index
    %c0_16 = arith.constant 0 : index
    %c0_17 = arith.constant 0 : index
    %15 = vector.load %arg3[%c7, %c0_16, %c0_17] : memref<9x8x128xf32, #tpu.memory_space<vmem>>, vector<1x8x128xf32>
    %16 = vector.shape_cast %15 : vector<1x8x128xf32> to vector<8x128xf32>
    %c8 = arith.constant 8 : index
    %c0_18 = arith.constant 0 : index
    %c0_19 = arith.constant 0 : index
    %17 = vector.load %arg3[%c8, %c0_18, %c0_19] : memref<9x8x128xf32, #tpu.memory_space<vmem>>, vector<1x8x128xf32>
    %18 = vector.shape_cast %17 : vector<1x8x128xf32> to vector<8x128xf32>
    %cst = arith.constant 0.000000e+00 : f32
    %19 = vector.broadcast %cst : f32 to vector<1x128xf32>
    %cst_20 = arith.constant 0.000000e+00 : f32
    %20 = vector.broadcast %cst_20 : f32 to vector<288x128xf32>
    %c0_21 = arith.constant 0 : index
    %c0_22 = arith.constant 0 : index
    %c0_23 = arith.constant 0 : index
    %21 = vector.load %arg1[%c0_21, %c0_22, %c0_23] : memref<1x328x8xf32, #tpu.memory_space<vmem>>, vector<1x288x8xf32>
    %22 = vector.shape_cast %21 : vector<1x288x8xf32> to vector<288x8xf32>
    %cst_24 = arith.constant dense<0.000000e+00> : vector<288x128xf32>
    %23 = tpu.matmul %22, %2, %cst_24 {dimension_numbers = #tpu.dot_dimension_numbers<[1], [0], [0], [1], [0, 0, 1, 1], [], []>} : vector<288x8xf32>, vector<8x128xf32>, vector<288x128xf32> -> vector<288x128xf32>
    %24 = arith.addf %20, %23 : vector<288x128xf32>
    %c0_25 = arith.constant 0 : index
    %c1_26 = arith.constant 1 : index
    %c0_27 = arith.constant 0 : index
    %25 = vector.load %arg1[%c0_25, %c1_26, %c0_27] : memref<1x328x8xf32, #tpu.memory_space<vmem>>, vector<1x288x8xf32>
    %26 = vector.shape_cast %25 : vector<1x288x8xf32> to vector<288x8xf32>
    %cst_28 = arith.constant dense<0.000000e+00> : vector<288x128xf32>
    %27 = tpu.matmul %26, %4, %cst_28 {dimension_numbers = #tpu.dot_dimension_numbers<[1], [0], [0], [1], [0, 0, 1, 1], [], []>} : vector<288x8xf32>, vector<8x128xf32>, vector<288x128xf32> -> vector<288x128xf32>
    %28 = arith.addf %24, %27 : vector<288x128xf32>
    %c0_29 = arith.constant 0 : index
    %c2_30 = arith.constant 2 : index
    %c0_31 = arith.constant 0 : index
    %29 = vector.load %arg1[%c0_29, %c2_30, %c0_31] : memref<1x328x8xf32, #tpu.memory_space<vmem>>, vector<1x288x8xf32>
    %30 = vector.shape_cast %29 : vector<1x288x8xf32> to vector<288x8xf32>
    %cst_32 = arith.constant dense<0.000000e+00> : vector<288x128xf32>
    %31 = tpu.matmul %30, %6, %cst_32 {dimension_numbers = #tpu.dot_dimension_numbers<[1], [0], [0], [1], [0, 0, 1, 1], [], []>} : vector<288x8xf32>, vector<8x128xf32>, vector<288x128xf32> -> vector<288x128xf32>
    %32 = arith.addf %28, %31 : vector<288x128xf32>
    %c0_33 = arith.constant 0 : index
    %c18 = arith.constant 18 : index
    %c0_34 = arith.constant 0 : index
    %33 = vector.load %arg1[%c0_33, %c18, %c0_34] : memref<1x328x8xf32, #tpu.memory_space<vmem>>, vector<1x288x8xf32>
    %34 = vector.shape_cast %33 : vector<1x288x8xf32> to vector<288x8xf32>
    %cst_35 = arith.constant dense<0.000000e+00> : vector<288x128xf32>
    %35 = tpu.matmul %34, %8, %cst_35 {dimension_numbers = #tpu.dot_dimension_numbers<[1], [0], [0], [1], [0, 0, 1, 1], [], []>} : vector<288x8xf32>, vector<8x128xf32>, vector<288x128xf32> -> vector<288x128xf32>
    %36 = arith.addf %32, %35 : vector<288x128xf32>
    %c0_36 = arith.constant 0 : index
    %c19 = arith.constant 19 : index
    %c0_37 = arith.constant 0 : index
    %37 = vector.load %arg1[%c0_36, %c19, %c0_37] : memref<1x328x8xf32, #tpu.memory_space<vmem>>, vector<1x288x8xf32>
    %38 = vector.shape_cast %37 : vector<1x288x8xf32> to vector<288x8xf32>
    %cst_38 = arith.constant dense<0.000000e+00> : vector<288x128xf32>
    %39 = tpu.matmul %38, %10, %cst_38 {dimension_numbers = #tpu.dot_dimension_numbers<[1], [0], [0], [1], [0, 0, 1, 1], [], []>} : vector<288x8xf32>, vector<8x128xf32>, vector<288x128xf32> -> vector<288x128xf32>
    %40 = arith.addf %36, %39 : vector<288x128xf32>
    %c0_39 = arith.constant 0 : index
    %c20 = arith.constant 20 : index
    %c0_40 = arith.constant 0 : index
    %41 = vector.load %arg1[%c0_39, %c20, %c0_40] : memref<1x328x8xf32, #tpu.memory_space<vmem>>, vector<1x288x8xf32>
    %42 = vector.shape_cast %41 : vector<1x288x8xf32> to vector<288x8xf32>
    %cst_41 = arith.constant dense<0.000000e+00> : vector<288x128xf32>
    %43 = tpu.matmul %42, %12, %cst_41 {dimension_numbers = #tpu.dot_dimension_numbers<[1], [0], [0], [1], [0, 0, 1, 1], [], []>} : vector<288x8xf32>, vector<8x128xf32>, vector<288x128xf32> -> vector<288x128xf32>
    %44 = arith.addf %40, %43 : vector<288x128xf32>
    %c0_42 = arith.constant 0 : index
    %c36 = arith.constant 36 : index
    %c0_43 = arith.constant 0 : index
    %45 = vector.load %arg1[%c0_42, %c36, %c0_43] : memref<1x328x8xf32, #tpu.memory_space<vmem>>, vector<1x288x8xf32>
    %46 = vector.shape_cast %45 : vector<1x288x8xf32> to vector<288x8xf32>
    %cst_44 = arith.constant dense<0.000000e+00> : vector<288x128xf32>
    %47 = tpu.matmul %46, %14, %cst_44 {dimension_numbers = #tpu.dot_dimension_numbers<[1], [0], [0], [1], [0, 0, 1, 1], [], []>} : vector<288x8xf32>, vector<8x128xf32>, vector<288x128xf32> -> vector<288x128xf32>
    %48 = arith.addf %44, %47 : vector<288x128xf32>
    %c0_45 = arith.constant 0 : index
    %c37 = arith.constant 37 : index
    %c0_46 = arith.constant 0 : index
    %49 = vector.load %arg1[%c0_45, %c37, %c0_46] : memref<1x328x8xf32, #tpu.memory_space<vmem>>, vector<1x288x8xf32>
    %50 = vector.shape_cast %49 : vector<1x288x8xf32> to vector<288x8xf32>
    %cst_47 = arith.constant dense<0.000000e+00> : vector<288x128xf32>
    %51 = tpu.matmul %50, %16, %cst_47 {dimension_numbers = #tpu.dot_dimension_numbers<[1], [0], [0], [1], [0, 0, 1, 1], [], []>} : vector<288x8xf32>, vector<8x128xf32>, vector<288x128xf32> -> vector<288x128xf32>
    %52 = arith.addf %48, %51 : vector<288x128xf32>
    %c0_48 = arith.constant 0 : index
    %c38 = arith.constant 38 : index
    %c0_49 = arith.constant 0 : index
    %53 = vector.load %arg1[%c0_48, %c38, %c0_49] : memref<1x328x8xf32, #tpu.memory_space<vmem>>, vector<1x288x8xf32>
    %54 = vector.shape_cast %53 : vector<1x288x8xf32> to vector<288x8xf32>
    %cst_50 = arith.constant dense<0.000000e+00> : vector<288x128xf32>
    %55 = tpu.matmul %54, %18, %cst_50 {dimension_numbers = #tpu.dot_dimension_numbers<[1], [0], [0], [1], [0, 0, 1, 1], [], []>} : vector<288x8xf32>, vector<8x128xf32>, vector<288x128xf32> -> vector<288x128xf32>
    %56 = arith.addf %52, %55 : vector<288x128xf32>
    %57 = vector.broadcast %0 : vector<1x128xf32> to vector<288x128xf32>
    %58 = arith.addf %56, %57 : vector<288x128xf32>
    %cst_51 = arith.constant 0.000000e+00 : f32
    %59 = vector.broadcast %cst_51 : f32 to vector<288x128xf32>
    %60 = arith.maximumf %58, %59 : vector<288x128xf32>
    %c0_52 = arith.constant 0 : index
    %c0_53 = arith.constant 0 : index
    %61 = vector.load %arg2[%c0_52, %c0_53] : memref<288x1xf32, #tpu.memory_space<vmem>>, vector<288x1xf32>
    %62 = vector.broadcast %61 : vector<288x1xf32> to vector<288x128xf32>
    %63 = arith.mulf %60, %62 : vector<288x128xf32>
    %cst_54 = arith.constant dense<0.000000e+00> : vector<128xf32>
    %64 = vector.multi_reduction <add>, %63, %cst_54 [0] : vector<288x128xf32> to vector<128xf32>
    %65 = vector.shape_cast %64 : vector<128xf32> to vector<1x128xf32>
    %66 = arith.addf %19, %65 : vector<1x128xf32>
    %cst_55 = arith.constant 3.906250e-03 : f32
    %67 = vector.broadcast %cst_55 : f32 to vector<1x128xf32>
    %68 = arith.mulf %66, %67 : vector<1x128xf32>
    %c0_56 = arith.constant 0 : index
    %c0_57 = arith.constant 0 : index
    %69 = vector.load %arg5[%c0_56, %c0_57] : memref<128x128xf32, #tpu.memory_space<vmem>>, vector<128x128xf32>
    %cst_58 = arith.constant dense<0.000000e+00> : vector<1x128xf32>
    %70 = tpu.matmul %68, %69, %cst_58 {dimension_numbers = #tpu.dot_dimension_numbers<[1], [0], [0], [1], [0, 0, 1, 1], [], []>} : vector<1x128xf32>, vector<128x128xf32>, vector<1x128xf32> -> vector<1x128xf32>
    %c0_59 = arith.constant 0 : index
    %c0_60 = arith.constant 0 : index
    %71 = vector.load %arg6[%c0_59, %c0_60] : memref<1x128xf32, #tpu.memory_space<vmem>>, vector<1x128xf32>
    %72 = arith.addf %70, %71 : vector<1x128xf32>
    %c0_61 = arith.constant 0 : index
    %c0_62 = arith.constant 0 : index
    %c0_63 = arith.constant 0 : index
    %73 = vector.load %arg7[%c0_61, %c0_62, %c0_63] : memref<1x1x128xf32, #tpu.memory_space<vmem>>, vector<1x1x128xf32>
    %74 = vector.shape_cast %73 : vector<1x1x128xf32> to vector<1x128xf32>
    %75 = vector.shape_cast %72 : vector<1x128xf32> to vector<1x1x128xf32>
    tpu.vector_store %arg7[%c0_61, %c0_62, %c0_63], %75 {strides = array<i32>} : memref<1x1x128xf32, #tpu.memory_space<vmem>>, vector<1x1x128xf32>,
    return
  }
  func.func @transform_0(%arg0: i32) -> (i32, i32, i32) {
    %c0_i32 = arith.constant 0 : i32
    %c0_i32_0 = arith.constant 0 : i32
    %c0_i32_1 = arith.constant 0 : i32
    return %arg0, %c0_i32, %c0_i32_0 : i32, i32, i32
  }
  func.func @transform_1(%arg0: i32) -> (i32, i32) {
    %c0_i32 = arith.constant 0 : i32
    %c0_i32_0 = arith.constant 0 : i32
    %c0_i32_1 = arith.constant 0 : i32
    return %c0_i32, %c0_i32_0 : i32, i32
  }
  func.func @transform_2(%arg0: i32) -> (i32, i32, i32) {
    %c0_i32 = arith.constant 0 : i32
    %c0_i32_0 = arith.constant 0 : i32
    %c0_i32_1 = arith.constant 0 : i32
    %c0_i32_2 = arith.constant 0 : i32
    return %c0_i32, %c0_i32_0, %c0_i32_1 : i32, i32, i32
  }
  func.func @transform_3(%arg0: i32) -> (i32, i32) {
    %c0_i32 = arith.constant 0 : i32
    %c0_i32_0 = arith.constant 0 : i32
    %c0_i32_1 = arith.constant 0 : i32
    return %c0_i32, %c0_i32_0 : i32, i32
  }
  func.func @transform_4(%arg0: i32) -> (i32, i32) {
    %c0_i32 = arith.constant 0 : i32
    %c0_i32_0 = arith.constant 0 : i32
    %c0_i32_1 = arith.constant 0 : i32
    return %c0_i32, %c0_i32_0 : i32, i32
  }
  func.func @transform_5(%arg0: i32) -> (i32, i32) {
    %c0_i32 = arith.constant 0 : i32
    %c0_i32_0 = arith.constant 0 : i32
    %c0_i32_1 = arith.constant 0 : i32
    return %c0_i32, %c0_i32_0 : i32, i32
  }
  func.func @transform_6(%arg0: i32) -> (i32, i32, i32) {
    %c0_i32 = arith.constant 0 : i32
    %c0_i32_0 = arith.constant 0 : i32
    %c0_i32_1 = arith.constant 0 : i32
    return %arg0, %c0_i32, %c0_i32_0 : i32, i32, i32
  }
}

</mosaic_0001>

<llo_original>
// kernel: custom_model_forward.1
$region0: #{custom_model_forward.1}
  #allocation0 [shape = 'u32[]', space=smem, size = 0x4, offset = 0x4, fixed_abs, tag = 'smem constant byte address 0x4 - core index']
  #allocation1 [shape = 'u32[72,128]{1,0:T(1,128)}', space=vmem, size = 0x9000, scoped, tag = 'internal scratch']
  %s0 = inlined_call_operand.vmem [shape: f32[2,328,8], index: 0, kind: input, shape index: {}]
  %s1 = inlined_call_operand.vmem [shape: f32[288,1], index: 1, kind: input, shape index: {}]
  %s2 = inlined_call_operand.vmem [shape: f32[9,8,128], index: 2, kind: input, shape index: {}]
  %s3 = inlined_call_operand.vmem [shape: f32[1,128], index: 3, kind: input, shape index: {}]
  %s4 = inlined_call_operand.vmem [shape: f32[128,128], index: 4, kind: input, shape index: {}]
  %s5 = inlined_call_operand.vmem [shape: f32[1,128], index: 5, kind: input, shape index: {}]
  %s6 = inlined_call_operand.hbm [shape: f32[2,1,128], index: 6, kind: output, shape index: {}]
  %s7 = sld [smem:[#allocation0]]
  $region57: #{custom_model_forward.1} parent=0
    _
  %s9 = ssub.s32 1, %s7
  %s10 = scalar_select 0, %s9, %s7
  $region1: #{custom_model_forward.1} parent=0
    #allocation2 [shape = 'u8[1024]{0}', space=vmem, size = 0x400, scoped, tag = 'output window, operand 0']
    #allocation3 [shape = 's32[2]{0}', space=sflag, size = 0x8, scoped, tag = 'scoped memory for custom_model_forward.1']
    %11 = vsyncpa [#allocation3], 0
    %s12 = scalar_lea.sflag [#allocation3], 1
    %13 = vsyncpa %s12, 0
    loop: start=0, step=1, limit=4
    $region2: #{custom_model_forward.1} parent=1 // loop_pre_header
      _
    $region3: #{custom_model_forward.1} parent=1 // loop_header
      %s15 = sphi 0, %s19
      %p16 = scmp.ge.s32.totalorder %s15, 4
      %s25 = sphi 0, %s27
      %s28 = sphi 0, %s25
      %s29 = sphi 0, %s28
      %s45 = sphi 0, %s29
      %s49 = sphi 0, %s49
      %s51 = sphi 0, %s49
      %s52 = sphi 0, %s51
      %s66 = sphi 0, %s52
      %s70 = sphi 0, %s70
      %s72 = sphi 0, %s70
      %s73 = sphi 0, %s72
      %s87 = sphi 0, %s73
      %s91 = sphi 0, %s91
      %s93 = sphi 0, %s91
      %s94 = sphi 0, %s93
      %s108 = sphi 0, %s94
      %s112 = sphi 0, %s112
      %s114 = sphi 0, %s112
      %s115 = sphi 0, %s114
      %s129 = sphi 0, %s115
      %s133 = sphi 0, %s133
      %s135 = sphi 0, %s133
      %s136 = sphi 0, %s135
      %s150 = sphi 0, %s136
      %s156 = sphi 0, %s158
      %s159 = sphi 0, %s156
      %s160 = sphi 0, %s159
      %s176 = sphi 0, %s160
    $region4: #{custom_model_forward.1} parent=1 // loop_header_branch
      %18 = sbr.rel (%p16) target = $region8
    $region5: #{custom_model_forward.1} parent=1 // loop_body
      %s20 = ssub.s32 %s15, 1
      %s21 = ssub.s32 %s15, 2
      %s22 = sadd.s32 %s15, 1
      %s23 = ssub.s32 %s15, %s22
      %p24 = scmp.eq.s32.totalorder %s23, 0
      %s26 = sadd.s32 %s25, 1
      %s27 = scalar_select %p24, %s25, %s26
      %p30 = pneg %p24
      %p31 = scmp.eq.s32.totalorder %s15, 1
      %p32 = por %p30, %p31
      %p33 = scmp.ne.s32.totalorder %s25, %s28
      %p34 = scmp.eq.s32.totalorder %s15, 0
      %p35 = por %p33, %p34
      %p36 = scmp.ne.s32.totalorder %s25, %s28
      %p37 = scmp.eq.s32.totalorder %s20, 1
      %p38 = por %p36, %p37
      %p39 = scmp.ne.s32.totalorder %s28, %s29
      %p40 = scmp.eq.s32.totalorder %s20, 0
      %p41 = por %p39, %p40
      %p42 = scmp.ne.s32.totalorder %s28, %s29
      %p43 = scmp.eq.s32.totalorder %s21, 1
      %p44 = por %p42, %p43
      %p46 = scmp.ne.s32.totalorder %s29, %s45
      %p47 = scmp.eq.s32.totalorder %s21, 0
      %p48 = por %p46, %p47
      %s50 = sadd.s32 %s49, 1
      %p53 = scmp.eq.s32.totalorder %s15, 1
      %p54 = scmp.ne.s32.totalorder %s49, %s51
      %p55 = scmp.eq.s32.totalorder %s15, 0
      %p56 = por %p54, %p55
      %p57 = scmp.ne.s32.totalorder %s49, %s51
      %p58 = scmp.eq.s32.totalorder %s20, 1
      %p59 = por %p57, %p58
      %p60 = scmp.ne.s32.totalorder %s51, %s52
      %p61 = scmp.eq.s32.totalorder %s20, 0
      %p62 = por %p60, %p61
      %p63 = scmp.ne.s32.totalorder %s51, %s52
      %p64 = scmp.eq.s32.totalorder %s21, 1
      %p65 = por %p63, %p64
      %p67 = scmp.ne.s32.totalorder %s52, %s66
      %p68 = scmp.eq.s32.totalorder %s21, 0
      %p69 = por %p67, %p68
      %s71 = sadd.s32 %s70, 1
      %p74 = scmp.eq.s32.totalorder %s15, 1
      %p75 = scmp.ne.s32.totalorder %s70, %s72
      %p76 = scmp.eq.s32.totalorder %s15, 0
      %p77 = por %p75, %p76
      %p78 = scmp.ne.s32.totalorder %s70, %s72
      %p79 = scmp.eq.s32.totalorder %s20, 1
      %p80 = por %p78, %p79
      %p81 = scmp.ne.s32.totalorder %s72, %s73
      %p82 = scmp.eq.s32.totalorder %s20, 0
      %p83 = por %p81, %p82
      %p84 = scmp.ne.s32.totalorder %s72, %s73
      %p85 = scmp.eq.s32.totalorder %s21, 1
      %p86 = por %p84, %p85
      %p88 = scmp.ne.s32.totalorder %s73, %s87
      %p89 = scmp.eq.s32.totalorder %s21, 0
      %p90 = por %p88, %p89
      %s92 = sadd.s32 %s91, 1
      %p95 = scmp.eq.s32.totalorder %s15, 1
      %p96 = scmp.ne.s32.totalorder %s91, %s93
      %p97 = scmp.eq.s32.totalorder %s15, 0
      %p98 = por %p96, %p97
      %p99 = scmp.ne.s32.totalorder %s91, %s93
      %p100 = scmp.eq.s32.totalorder %s20, 1
      %p101 = por %p99, %p100
      %p102 = scmp.ne.s32.totalorder %s93, %s94
      %p103 = scmp.eq.s32.totalorder %s20, 0
      %p104 = por %p102, %p103
      %p105 = scmp.ne.s32.totalorder %s93, %s94
      %p106 = scmp.eq.s32.totalorder %s21, 1
      %p107 = por %p105, %p106
      %p109 = scmp.ne.s32.totalorder %s94, %s108
      %p110 = scmp.eq.s32.totalorder %s21, 0
      %p111 = por %p109, %p110
      %s113 = sadd.s32 %s112, 1
      %p116 = scmp.eq.s32.totalorder %s15, 1
      %p117 = scmp.ne.s32.totalorder %s112, %s114
      %p118 = scmp.eq.s32.totalorder %s15, 0
      %p119 = por %p117, %p118
      %p120 = scmp.ne.s32.totalorder %s112, %s114
      %p121 = scmp.eq.s32.totalorder %s20, 1
      %p122 = por %p120, %p121
      %p123 = scmp.ne.s32.totalorder %s114, %s115
      %p124 = scmp.eq.s32.totalorder %s20, 0
      %p125 = por %p123, %p124
      %p126 = scmp.ne.s32.totalorder %s114, %s115
      %p127 = scmp.eq.s32.totalorder %s21, 1
      %p128 = por %p126, %p127
      %p130 = scmp.ne.s32.totalorder %s115, %s129
      %p131 = scmp.eq.s32.totalorder %s21, 0
      %p132 = por %p130, %p131
      %s134 = sadd.s32 %s133, 1
      %p137 = scmp.eq.s32.totalorder %s15, 1
      %p138 = scmp.ne.s32.totalorder %s133, %s135
      %p139 = scmp.eq.s32.totalorder %s15, 0
      %p140 = por %p138, %p139
      %p141 = scmp.ne.s32.totalorder %s133, %s135
      %p142 = scmp.eq.s32.totalorder %s20, 1
      %p143 = por %p141, %p142
      %p144 = scmp.ne.s32.totalorder %s135, %s136
      %p145 = scmp.eq.s32.totalorder %s20, 0
      %p146 = por %p144, %p145
      %p147 = scmp.ne.s32.totalorder %s135, %s136
      %p148 = scmp.eq.s32.totalorder %s21, 1
      %p149 = por %p147, %p148
      %p151 = scmp.ne.s32.totalorder %s136, %s150
      %p152 = scmp.eq.s32.totalorder %s21, 0
      %p153 = por %p151, %p152
      %s154 = ssub.s32 %s15, %s22
      %p155 = scmp.eq.s32.totalorder %s154, 0
      %s157 = sadd.s32 %s156, 1
      %s158 = scalar_select %p155, %s156, %s157
      %p161 = pneg %p155
      %p162 = scmp.eq.s32.totalorder %s15, 1
      %p163 = por %p161, %p162
      %p164 = scmp.ne.s32.totalorder %s156, %s159
      %p165 = scmp.eq.s32.totalorder %s15, 0
      %p166 = por %p164, %p165
      %p167 = scmp.ne.s32.totalorder %s156, %s159
      %p168 = scmp.eq.s32.totalorder %s20, 1
      %p169 = por %p167, %p168
      %p170 = scmp.ne.s32.totalorder %s159, %s160
      %p171 = scmp.eq.s32.totalorder %s20, 0
      %p172 = por %p170, %p171
      %p173 = scmp.ne.s32.totalorder %s159, %s160
      %p174 = scmp.eq.s32.totalorder %s21, 1
      %p175 = por %p173, %p174
      %p177 = scmp.ne.s32.totalorder %s160, %s176
      %p178 = scmp.eq.s32.totalorder %s21, 0
      %p179 = por %p177, %p178
      %p180 = scmp.le.s32.totalorder 1, %s15
      %p181 = scmp.lt.s32.totalorder %s15, 3
      %p182 = pnand %p180, %p181
      %p183 = pneg %p182
      // Predicated region
      $region9: #{custom_model_forward.1} parent=5 // pred_check
        _
      $region10: #{custom_model_forward.1} parent=5 // pred_check_branch
        %185 = sbr.rel (%p182) target = $region12
      $region11: #{custom_model_forward.1} parent=5 // pred_region
        %s186 = ssub.s32 %s15, 1
        // Predicated region
        $region13: #{custom_model_forward.1} parent=11 // pred_check
          %p187 = pneg %p62
        $region14: #{custom_model_forward.1} parent=11 // pred_check_branch
          %189 = sbr.rel (%p187) target = $region16
        $region15: #{custom_model_forward.1} parent=11 // pred_region
          _
        $region16: #{custom_model_forward.1} parent=11 // pred_fallthru
          _
        // Predicated region
        $region17: #{custom_model_forward.1} parent=11 // pred_check
          %p190 = pneg %p83
        $region18: #{custom_model_forward.1} parent=11 // pred_check_branch
          %192 = sbr.rel (%p190) target = $region20
        $region19: #{custom_model_forward.1} parent=11 // pred_region
          _
        $region20: #{custom_model_forward.1} parent=11 // pred_fallthru
          _
        // Predicated region
        $region21: #{custom_model_forward.1} parent=11 // pred_check
          %p193 = pneg %p104
        $region22: #{custom_model_forward.1} parent=11 // pred_check_branch
          %195 = sbr.rel (%p193) target = $region24
        $region23: #{custom_model_forward.1} parent=11 // pred_region
          _
        $region24: #{custom_model_forward.1} parent=11 // pred_fallthru
          _
        // Predicated region
        $region25: #{custom_model_forward.1} parent=11 // pred_check
          %p196 = pneg %p125
        $region26: #{custom_model_forward.1} parent=11 // pred_check_branch
          %198 = sbr.rel (%p196) target = $region28
        $region27: #{custom_model_forward.1} parent=11 // pred_region
          _
        $region28: #{custom_model_forward.1} parent=11 // pred_fallthru
          _
        // Predicated region
        $region29: #{custom_model_forward.1} parent=11 // pred_check
          %p199 = pneg %p146
        $region30: #{custom_model_forward.1} parent=11 // pred_check_branch
          %201 = sbr.rel (%p199) target = $region32
        $region31: #{custom_model_forward.1} parent=11 // pred_region
          _
        $region32: #{custom_model_forward.1} parent=11 // pred_fallthru
          _
      $region12: #{custom_model_forward.1} parent=5 // pred_fallthru
        _
      %p202 = scmp.lt.s32.totalorder %s15, 2
      // Predicated region
      $region33: #{custom_model_forward.1} parent=5 // pred_check
        %p203 = pneg %p202
      $region34: #{custom_model_forward.1} parent=5 // pred_check_branch
        %205 = sbr.rel (%p203) target = $region36
      $region35: #{custom_model_forward.1} parent=5 // pred_region
        // Predicated region
        $region37: #{custom_model_forward.1} parent=35 // pred_check
          %p206 = pneg %p35
        $region38: #{custom_model_forward.1} parent=35 // pred_check_branch
          %208 = sbr.rel (%p206) target = $region40
        $region39: #{custom_model_forward.1} parent=35 // pred_region
          %p209 = scmp.lt.s32.totalorder %s15, 1
          %s210 = scalar_select %p209, %s15, 1
          %s211 = smul.addr %s210, 41
          %s212 = smul.addr %s211, 8
          %s213 = scalar_lea.vmem %s0, %s212
        $region40: #{custom_model_forward.1} parent=35 // pred_fallthru
          _
      $region36: #{custom_model_forward.1} parent=5 // pred_fallthru
        _
      %p214 = scmp.le.s32.totalorder 1, %s15
      %p215 = scmp.lt.s32.totalorder %s15, 3
      %p216 = pnand %p214, %p215
      %p217 = pneg %p216
      // Predicated region
      $region41: #{custom_model_forward.1} parent=5 // pred_check
        _
      $region42: #{custom_model_forward.1} parent=5 // pred_check_branch
        %219 = sbr.rel (%p216) target = $region44
      $region43: #{custom_model_forward.1} parent=5 // pred_region
        %s220 = ssub.s32 %s15, 1
        %p221 = scmp.lt.s32.totalorder %s20, 1
        %s222 = scalar_select %p221, %s20, 1
        %s223 = smul.addr %s222, 41
        %s224 = smul.addr %s223, 8
        %s225 = scalar_lea.vmem %s0, %s224
        %p226 = pneg %p41
        %p227 = pneg %p38
        %p228 = pneg %p62
        %p229 = pneg %p59
        %p230 = pneg %p83
        %p231 = pneg %p80
        %p232 = pneg %p104
        %p233 = pneg %p101
        %p234 = pneg %p125
        %p235 = pneg %p122
        %p236 = pneg %p146
        %p237 = pneg %p143
        %p238 = pneg %p172
        %p239 = pneg %p169
        %s240 = sand.u32 %s159, 1
        %s241 = scalar_lea.sflag [#allocation3], %s240
        %s242 = sand.u32 %s159, 1
        %s243 = scalar_lea.vmem [#allocation2], %s242
        %p244 = scmp.lt.s32.totalorder %s20, 1
        %s245 = scalar_select %p244, %s20, 1
        %s246 = smul.addr %s245, 41
        %s247 = smul.addr %s246, 8
        %s248 = scalar_lea.vmem %s0, %s247
        %v249 = vld [vmem:[%s3] sm:$0x1]
        %v250 = vld [vmem:[%s2] sm:$0xff]
        %s251 = scalar_lea.vmem %s2, 8
        %v252 = vld [vmem:[%s251] sm:$0xff]
        %s253 = scalar_lea.vmem %s2, 16
        %v254 = vld [vmem:[%s253] sm:$0xff]
        %s255 = scalar_lea.vmem %s2, 24
        %v256 = vld [vmem:[%s255] sm:$0xff]
        %s257 = scalar_lea.vmem %s2, 32
        %v258 = vld [vmem:[%s257] sm:$0xff]
        %s259 = scalar_lea.vmem %s2, 40
        %v260 = vld [vmem:[%s259] sm:$0xff]
        %s261 = scalar_lea.vmem %s2, 48
        %v262 = vld [vmem:[%s261] sm:$0xff]
        %s263 = scalar_lea.vmem %s2, 56
        %v264 = vld [vmem:[%s263] sm:$0xff]
        %s265 = scalar_lea.vmem %s2, 64
        %v266 = vld [vmem:[%s265] sm:$0xff]
        %v267 = vld [vmem:[%s248] sm:$0xff]
        %v268 = vld [vmem:[%s248 + $0x8] sm:$0xff]
        %v269 = vld [vmem:[%s248 + $0x10] sm:$0xff]
        %v270 = vld [vmem:[%s248 + $0x18] sm:$0xff]
        %v271 = vld [vmem:[%s248 + $0x20] sm:$0xff]
        %v272 = vld [vmem:[%s248 + $0x28] sm:$0xff]
        %v273 = vld [vmem:[%s248 + $0x30] sm:$0xff]
        %v274 = vld [vmem:[%s248 + $0x38] sm:$0xff]
        %v275 = vld [vmem:[%s248 + $0x40] sm:$0xff]
        %v276 = vld [vmem:[%s248 + $0x48] sm:$0xff]
        %v277 = vld [vmem:[%s248 + $0x50] sm:$0xff]
        %v278 = vld [vmem:[%s248 + $0x58] sm:$0xff]
        %v279 = vld [vmem:[%s248 + $0x60] sm:$0xff]
        %v280 = vld [vmem:[%s248 + $0x68] sm:$0xff]
        %v281 = vld [vmem:[%s248 + $0x70] sm:$0xff]
        %v282 = vld [vmem:[%s248 + $0x78] sm:$0xff]
        %v283 = vld [vmem:[%s248 + $0x80] sm:$0xff]
        %v284 = vld [vmem:[%s248 + $0x88] sm:$0xff]
        %v285 = vld [vmem:[%s248 + $0x90] sm:$0xff]
        %v286 = vld [vmem:[%s248 + $0x98] sm:$0xff]
        %v287 = vld [vmem:[%s248 + $0xa0] sm:$0xff]
        %v288 = vld [vmem:[%s248 + $0xa8] sm:$0xff]
        %v289 = vld [vmem:[%s248 + $0xb0] sm:$0xff]
        %v290 = vld [vmem:[%s248 + $0xb8] sm:$0xff]
        %v291 = vld [vmem:[%s248 + $0xc0] sm:$0xff]
        %v292 = vld [vmem:[%s248 + $0xc8] sm:$0xff]
        %v293 = vld [vmem:[%s248 + $0xd0] sm:$0xff]
        %v294 = vld [vmem:[%s248 + $0xd8] sm:$0xff]
        %v295 = vld [vmem:[%s248 + $0xe0] sm:$0xff]
        %v296 = vld [vmem:[%s248 + $0xe8] sm:$0xff]
        %v297 = vld [vmem:[%s248 + $0xf0] sm:$0xff]
        %v298 = vld [vmem:[%s248 + $0xf8] sm:$0xff]
        %v299 = vld [vmem:[%s248 + $0x100] sm:$0xff]
        %v300 = vld [vmem:[%s248 + $0x108] sm:$0xff]
        %v301 = vld [vmem:[%s248 + $0x110] sm:$0xff]
        %v302 = vld [vmem:[%s248 + $0x118] sm:$0xff]
        %v303 = vld [vmem:[%s248 + $0x1] sm:$0xff]
        %v304 = vld [vmem:[%s248 + $0x9] sm:$0xff]
        %v305 = vld [vmem:[%s248 + $0x11] sm:$0xff]
        %v306 = vld [vmem:[%s248 + $0x19] sm:$0xff]
        %v307 = vld [vmem:[%s248 + $0x21] sm:$0xff]
        %v308 = vld [vmem:[%s248 + $0x29] sm:$0xff]
        %v309 = vld [vmem:[%s248 + $0x31] sm:$0xff]
        %v310 = vld [vmem:[%s248 + $0x39] sm:$0xff]
        %v311 = vld [vmem:[%s248 + $0x41] sm:$0xff]
        %v312 = vld [vmem:[%s248 + $0x49] sm:$0xff]
        %v313 = vld [vmem:[%s248 + $0x51] sm:$0xff]
        %v314 = vld [vmem:[%s248 + $0x59] sm:$0xff]
        %v315 = vld [vmem:[%s248 + $0x61] sm:$0xff]
        %v316 = vld [vmem:[%s248 + $0x69] sm:$0xff]
        %v317 = vld [vmem:[%s248 + $0x71] sm:$0xff]
        %v318 = vld [vmem:[%s248 + $0x79] sm:$0xff]
        %v319 = vld [vmem:[%s248 + $0x81] sm:$0xff]
        %v320 = vld [vmem:[%s248 + $0x89] sm:$0xff]
        %v321 = vld [vmem:[%s248 + $0x91] sm:$0xff]
        %v322 = vld [vmem:[%s248 + $0x99] sm:$0xff]
        %v323 = vld [vmem:[%s248 + $0xa1] sm:$0xff]
        %v324 = vld [vmem:[%s248 + $0xa9] sm:$0xff]
        %v325 = vld [vmem:[%s248 + $0xb1] sm:$0xff]
        %v326 = vld [vmem:[%s248 + $0xb9] sm:$0xff]
        %v327 = vld [vmem:[%s248 + $0xc1] sm:$0xff]
        %v328 = vld [vmem:[%s248 + $0xc9] sm:$0xff]
        %v329 = vld [vmem:[%s248 + $0xd1] sm:$0xff]
        %v330 = vld [vmem:[%s248 + $0xd9] sm:$0xff]
        %v331 = vld [vmem:[%s248 + $0xe1] sm:$0xff]
        %v332 = vld [vmem:[%s248 + $0xe9] sm:$0xff]
        %v333 = vld [vmem:[%s248 + $0xf1] sm:$0xff]
        %v334 = vld [vmem:[%s248 + $0xf9] sm:$0xff]
        %v335 = vld [vmem:[%s248 + $0x101] sm:$0xff]
        %v336 = vld [vmem:[%s248 + $0x109] sm:$0xff]
        %v337 = vld [vmem:[%s248 + $0x111] sm:$0xff]
        %v338 = vld [vmem:[%s248 + $0x119] sm:$0xff]
        %vm339 = vcmask 64512
        %v341 = vsel %vm339, %v303, 0
        %v344 = vsel %vm339, %v304, 0
        %v347 = vsel %vm339, %v305, 0
        %v350 = vsel %vm339, %v306, 0
        %v353 = vsel %vm339, %v307, 0
        %v356 = vsel %vm339, %v308, 0
        %v359 = vsel %vm339, %v309, 0
        %v362 = vsel %vm339, %v310, 0
        %v365 = vsel %vm339, %v311, 0
        %v368 = vsel %vm339, %v312, 0
        %v371 = vsel %vm339, %v313, 0
        %v374 = vsel %vm339, %v314, 0
        %v377 = vsel %vm339, %v315, 0
        %v380 = vsel %vm339, %v316, 0
        %v383 = vsel %vm339, %v317, 0
        %v386 = vsel %vm339, %v318, 0
        %v389 = vsel %vm339, %v319, 0
        %v392 = vsel %vm339, %v320, 0
        %v395 = vsel %vm339, %v321, 0
        %v398 = vsel %vm339, %v322, 0
        %v401 = vsel %vm339, %v323, 0
        %v404 = vsel %vm339, %v324, 0
        %v407 = vsel %vm339, %v325, 0
        %v410 = vsel %vm339, %v326, 0
        %v413 = vsel %vm339, %v327, 0
        %v416 = vsel %vm339, %v328, 0
        %v419 = vsel %vm339, %v329, 0
        %v422 = vsel %vm339, %v330, 0
        %v425 = vsel %vm339, %v331, 0
        %v428 = vsel %vm339, %v332, 0
        %v431 = vsel %vm339, %v333, 0
        %v434 = vsel %vm339, %v334, 0
        %v437 = vsel %vm339, %v335, 0
        %v440 = vsel %vm339, %v336, 0
        %v443 = vsel %vm339, %v337, 0
        %v446 = vsel %vm339, %v338, 0
        %448 = vmatpush.msra.mxu0 0.0
        %449 = vmatpush.msra.mxu0 0.0
        %450 = vmatpush.msra.mxu0 0.0
        %451 = vmatpush.msra.mxu0 0.0
        %452 = vmatpush.msra.mxu0 0.0
        %453 = vmatpush.msra.mxu0 0.0
        %454 = vmatpush.msra.mxu0 0.0
        %455 = vmatpush.msra.mxu0 0.0
        %456 = vmatpush.msra.mxu0 0.0
        %457 = vmatpush.msra.mxu0 0.0
        %458 = vmatpush.msra.mxu0 0.0
        %459 = vmatpush.msra.mxu0 0.0
        %460 = vmatpush.msra.mxu0 0.0
        %461 = vmatpush.msra.mxu0 0.0
        %462 = vmatpush.msra.mxu0 0.0
        %463 = vmatpush.msra.mxu0 %v252
        %464 = vmatmul.f32.gmra.mxu0 %v341
        %v465 = vpop.f32.mrf.mxu0
        %v466 = vadd.f32 0.0, %v465
        %467 = vmatmul.f32.gmra.mxu0 %v344
        %v468 = vpop.f32.mrf.mxu0
        %v469 = vadd.f32 0.0, %v468
        %470 = vmatmul.f32.gmra.mxu0 %v347
        %v471 = vpop.f32.mrf.mxu0
        %v472 = vadd.f32 0.0, %v471
        %473 = vmatmul.f32.gmra.mxu0 %v350
        %v474 = vpop.f32.mrf.mxu0
        %v475 = vadd.f32 0.0, %v474
        %476 = vmatmul.f32.gmra.mxu0 %v353
        %v477 = vpop.f32.mrf.mxu0
        %v478 = vadd.f32 0.0, %v477
        %479 = vmatmul.f32.gmra.mxu0 %v356
        %v480 = vpop.f32.mrf.mxu0
        %v481 = vadd.f32 0.0, %v480
        %482 = vmatmul.f32.gmra.mxu0 %v359
        %v483 = vpop.f32.mrf.mxu0
        %v484 = vadd.f32 0.0, %v483
        %485 = vmatmul.f32.gmra.mxu0 %v362
        %v486 = vpop.f32.mrf.mxu0
        %v487 = vadd.f32 0.0, %v486
        %488 = vmatmul.f32.gmra.mxu0 %v365
        %v489 = vpop.f32.mrf.mxu0
        %v490 = vadd.f32 0.0, %v489
        %491 = vmatmul.f32.gmra.mxu0 %v368
        %v492 = vpop.f32.mrf.mxu0
        %v493 = vadd.f32 0.0, %v492
        %494 = vmatmul.f32.gmra.mxu0 %v371
        %v495 = vpop.f32.mrf.mxu0
        %v496 = vadd.f32 0.0, %v495
        %497 = vmatmul.f32.gmra.mxu0 %v374
        %v498 = vpop.f32.mrf.mxu0
        %v499 = vadd.f32 0.0, %v498
        %500 = vmatmul.f32.gmra.mxu0 %v377
        %v501 = vpop.f32.mrf.mxu0
        %v502 = vadd.f32 0.0, %v501
        %503 = vmatmul.f32.gmra.mxu0 %v380
        %v504 = vpop.f32.mrf.mxu0
        %v505 = vadd.f32 0.0, %v504
        %506 = vmatmul.f32.gmra.mxu0 %v383
        %v507 = vpop.f32.mrf.mxu0
        %v508 = vadd.f32 0.0, %v507
        %509 = vmatmul.f32.gmra.mxu0 %v386
        %v510 = vpop.f32.mrf.mxu0
        %v511 = vadd.f32 0.0, %v510
        %512 = vmatmul.f32.gmra.mxu0 %v389
        %v513 = vpop.f32.mrf.mxu0
        %v514 = vadd.f32 0.0, %v513
        %515 = vmatmul.f32.gmra.mxu0 %v392
        %v516 = vpop.f32.mrf.mxu0
        %v517 = vadd.f32 0.0, %v516
        %518 = vmatmul.f32.gmra.mxu0 %v395
        %v519 = vpop.f32.mrf.mxu0
        %v520 = vadd.f32 0.0, %v519
        %521 = vmatmul.f32.gmra.mxu0 %v398
        %v522 = vpop.f32.mrf.mxu0
        %v523 = vadd.f32 0.0, %v522
        %524 = vmatmul.f32.gmra.mxu0 %v401
        %v525 = vpop.f32.mrf.mxu0
        %v526 = vadd.f32 0.0, %v525
        %527 = vmatmul.f32.gmra.mxu0 %v404
        %v528 = vpop.f32.mrf.mxu0
        %v529 = vadd.f32 0.0, %v528
        %530 = vmatmul.f32.gmra.mxu0 %v407
        %v531 = vpop.f32.mrf.mxu0
        %v532 = vadd.f32 0.0, %v531
        %533 = vmatmul.f32.gmra.mxu0 %v410
        %v534 = vpop.f32.mrf.mxu0
        %v535 = vadd.f32 0.0, %v534
        %536 = vmatmul.f32.gmra.mxu0 %v413
        %v537 = vpop.f32.mrf.mxu0
        %v538 = vadd.f32 0.0, %v537
        %539 = vmatmul.f32.gmra.mxu0 %v416
        %v540 = vpop.f32.mrf.mxu0
        %v541 = vadd.f32 0.0, %v540
        %542 = vmatmul.f32.gmra.mxu0 %v419
        %v543 = vpop.f32.mrf.mxu0
        %v544 = vadd.f32 0.0, %v543
        %545 = vmatmul.f32.gmra.mxu0 %v422
        %v546 = vpop.f32.mrf.mxu0
        %v547 = vadd.f32 0.0, %v546
        %548 = vmatmul.f32.gmra.mxu0 %v425
        %v549 = vpop.f32.mrf.mxu0
        %v550 = vadd.f32 0.0, %v549
        %551 = vmatmul.f32.gmra.mxu0 %v428
        %v552 = vpop.f32.mrf.mxu0
        %v553 = vadd.f32 0.0, %v552
        %554 = vmatmul.f32.gmra.mxu0 %v431
        %v555 = vpop.f32.mrf.mxu0
        %v556 = vadd.f32 0.0, %v555
        %557 = vmatmul.f32.gmra.mxu0 %v434
        %v558 = vpop.f32.mrf.mxu0
        %v559 = vadd.f32 0.0, %v558
        %560 = vmatmul.f32.gmra.mxu0 %v437
        %v561 = vpop.f32.mrf.mxu0
        %v562 = vadd.f32 0.0, %v561
        %563 = vmatmul.f32.gmra.mxu0 %v440
        %v564 = vpop.f32.mrf.mxu0
        %v565 = vadd.f32 0.0, %v564
        %566 = vmatmul.f32.gmra.mxu0 %v443
        %v567 = vpop.f32.mrf.mxu0
        %v568 = vadd.f32 0.0, %v567
        %569 = vmatmul.f32.gmra.mxu0 %v446
        %v570 = vpop.f32.mrf.mxu0
        %v571 = vadd.f32 0.0, %v570
        %572 = vdwg.mxu0
        %v574 = vsel %vm339, %v267, 0
        %v577 = vsel %vm339, %v268, 0
        %v580 = vsel %vm339, %v269, 0
        %v583 = vsel %vm339, %v270, 0
        %v586 = vsel %vm339, %v271, 0
        %v589 = vsel %vm339, %v272, 0
        %v592 = vsel %vm339, %v273, 0
        %v595 = vsel %vm339, %v274, 0
        %v598 = vsel %vm339, %v275, 0
        %v601 = vsel %vm339, %v276, 0
        %v604 = vsel %vm339, %v277, 0
        %v607 = vsel %vm339, %v278, 0
        %v610 = vsel %vm339, %v279, 0
        %v613 = vsel %vm339, %v280, 0
        %v616 = vsel %vm339, %v281, 0
        %v619 = vsel %vm339, %v282, 0
        %v622 = vsel %vm339, %v283, 0
        %v625 = vsel %vm339, %v284, 0
        %v628 = vsel %vm339, %v285, 0
        %v631 = vsel %vm339, %v286, 0
        %v634 = vsel %vm339, %v287, 0
        %v637 = vsel %vm339, %v288, 0
        %v640 = vsel %vm339, %v289, 0
        %v643 = vsel %vm339, %v290, 0
        %v646 = vsel %vm339, %v291, 0
        %v649 = vsel %vm339, %v292, 0
        %v652 = vsel %vm339, %v293, 0
        %v655 = vsel %vm339, %v294, 0
        %v658 = vsel %vm339, %v295, 0
        %v661 = vsel %vm339, %v296, 0
        %v664 = vsel %vm339, %v297, 0
        %v667 = vsel %vm339, %v298, 0
        %v670 = vsel %vm339, %v299, 0
        %v673 = vsel %vm339, %v300, 0
        %v676 = vsel %vm339, %v301, 0
        %v679 = vsel %vm339, %v302, 0
        %681 = vmatpush.msra.mxu0 0.0
        %682 = vmatpush.msra.mxu0 0.0
        %683 = vmatpush.msra.mxu0 0.0
        %684 = vmatpush.msra.mxu0 0.0
        %685 = vmatpush.msra.mxu0 0.0
        %686 = vmatpush.msra.mxu0 0.0
        %687 = vmatpush.msra.mxu0 0.0
        %688 = vmatpush.msra.mxu0 0.0
        %689 = vmatpush.msra.mxu0 0.0
        %690 = vmatpush.msra.mxu0 0.0
        %691 = vmatpush.msra.mxu0 0.0
        %692 = vmatpush.msra.mxu0 0.0
        %693 = vmatpush.msra.mxu0 0.0
        %694 = vmatpush.msra.mxu0 0.0
        %695 = vmatpush.msra.mxu0 0.0
        %696 = vmatpush.msra.mxu0 %v250
        %697 = vmatmul.f32.gmra.mxu0 %v574
        %v698 = vpop.f32.mrf.mxu0
        %v699 = vadd.f32 %v466, %v698
        %700 = vmatmul.f32.gmra.mxu0 %v577
        %v701 = vpop.f32.mrf.mxu0
        %v702 = vadd.f32 %v469, %v701
        %703 = vmatmul.f32.gmra.mxu0 %v580
        %v704 = vpop.f32.mrf.mxu0
        %v705 = vadd.f32 %v472, %v704
        %706 = vmatmul.f32.gmra.mxu0 %v583
        %v707 = vpop.f32.mrf.mxu0
        %v708 = vadd.f32 %v475, %v707
        %709 = vmatmul.f32.gmra.mxu0 %v586
        %v710 = vpop.f32.mrf.mxu0
        %v711 = vadd.f32 %v478, %v710
        %712 = vmatmul.f32.gmra.mxu0 %v589
        %v713 = vpop.f32.mrf.mxu0
        %v714 = vadd.f32 %v481, %v713
        %715 = vmatmul.f32.gmra.mxu0 %v592
        %v716 = vpop.f32.mrf.mxu0
        %v717 = vadd.f32 %v484, %v716
        %718 = vmatmul.f32.gmra.mxu0 %v595
        %v719 = vpop.f32.mrf.mxu0
        %v720 = vadd.f32 %v487, %v719
        %721 = vmatmul.f32.gmra.mxu0 %v598
        %v722 = vpop.f32.mrf.mxu0
        %v723 = vadd.f32 %v490, %v722
        %724 = vmatmul.f32.gmra.mxu0 %v601
        %v725 = vpop.f32.mrf.mxu0
        %v726 = vadd.f32 %v493, %v725
        %727 = vmatmul.f32.gmra.mxu0 %v604
        %v728 = vpop.f32.mrf.mxu0
        %v729 = vadd.f32 %v496, %v728
        %730 = vmatmul.f32.gmra.mxu0 %v607
        %v731 = vpop.f32.mrf.mxu0
        %v732 = vadd.f32 %v499, %v731
        %733 = vmatmul.f32.gmra.mxu0 %v610
        %v734 = vpop.f32.mrf.mxu0
        %v735 = vadd.f32 %v502, %v734
        %736 = vmatmul.f32.gmra.mxu0 %v613
        %v737 = vpop.f32.mrf.mxu0
        %v738 = vadd.f32 %v505, %v737
        %739 = vmatmul.f32.gmra.mxu0 %v616
        %v740 = vpop.f32.mrf.mxu0
        %v741 = vadd.f32 %v508, %v740
        %742 = vmatmul.f32.gmra.mxu0 %v619
        %v743 = vpop.f32.mrf.mxu0
        %v744 = vadd.f32 %v511, %v743
        %745 = vmatmul.f32.gmra.mxu0 %v622
        %v746 = vpop.f32.mrf.mxu0
        %v747 = vadd.f32 %v514, %v746
        %748 = vmatmul.f32.gmra.mxu0 %v625
        %v749 = vpop.f32.mrf.mxu0
        %v750 = vadd.f32 %v517, %v749
        %751 = vmatmul.f32.gmra.mxu0 %v628
        %v752 = vpop.f32.mrf.mxu0
        %v753 = vadd.f32 %v520, %v752
        %754 = vmatmul.f32.gmra.mxu0 %v631
        %v755 = vpop.f32.mrf.mxu0
        %v756 = vadd.f32 %v523, %v755
        %757 = vmatmul.f32.gmra.mxu0 %v634
        %v758 = vpop.f32.mrf.mxu0
        %v759 = vadd.f32 %v526, %v758
        %760 = vmatmul.f32.gmra.mxu0 %v637
        %v761 = vpop.f32.mrf.mxu0
        %v762 = vadd.f32 %v529, %v761
        %763 = vmatmul.f32.gmra.mxu0 %v640
        %v764 = vpop.f32.mrf.mxu0
        %v765 = vadd.f32 %v532, %v764
        %766 = vmatmul.f32.gmra.mxu0 %v643
        %v767 = vpop.f32.mrf.mxu0
        %v768 = vadd.f32 %v535, %v767
        %769 = vmatmul.f32.gmra.mxu0 %v646
        %v770 = vpop.f32.mrf.mxu0
        %v771 = vadd.f32 %v538, %v770
        %772 = vmatmul.f32.gmra.mxu0 %v649
        %v773 = vpop.f32.mrf.mxu0
        %v774 = vadd.f32 %v541, %v773
        %775 = vmatmul.f32.gmra.mxu0 %v652
        %v776 = vpop.f32.mrf.mxu0
        %v777 = vadd.f32 %v544, %v776
        %778 = vmatmul.f32.gmra.mxu0 %v655
        %v779 = vpop.f32.mrf.mxu0
        %v780 = vadd.f32 %v547, %v779
        %781 = vmatmul.f32.gmra.mxu0 %v658
        %v782 = vpop.f32.mrf.mxu0
        %v783 = vadd.f32 %v550, %v782
        %784 = vmatmul.f32.gmra.mxu0 %v661
        %v785 = vpop.f32.mrf.mxu0
        %v786 = vadd.f32 %v553, %v785
        %787 = vmatmul.f32.gmra.mxu0 %v664
        %v788 = vpop.f32.mrf.mxu0
        %v789 = vadd.f32 %v556, %v788
        %790 = vmatmul.f32.gmra.mxu0 %v667
        %v791 = vpop.f32.mrf.mxu0
        %v792 = vadd.f32 %v559, %v791
        %793 = vmatmul.f32.gmra.mxu0 %v670
        %v794 = vpop.f32.mrf.mxu0
        %v795 = vadd.f32 %v562, %v794
        %796 = vmatmul.f32.gmra.mxu0 %v673
        %v797 = vpop.f32.mrf.mxu0
        %v798 = vadd.f32 %v565, %v797
        %799 = vmatmul.f32.gmra.mxu0 %v676
        %v800 = vpop.f32.mrf.mxu0
        %v801 = vadd.f32 %v568, %v800
        %802 = vmatmul.f32.gmra.mxu0 %v679
        %v803 = vpop.f32.mrf.mxu0
        %v804 = vadd.f32 %v571, %v803
        %805 = vdwg.mxu0
        %v806 = vld [vmem:[%s248 + $0x2] sm:$0xff]
        %v807 = vld [vmem:[%s248 + $0xa] sm:$0xff]
        %v808 = vld [vmem:[%s248 + $0x12] sm:$0xff]
        %v809 = vld [vmem:[%s248 + $0x1a] sm:$0xff]
        %v810 = vld [vmem:[%s248 + $0x22] sm:$0xff]
        %v811 = vld [vmem:[%s248 + $0x2a] sm:$0xff]
        %v812 = vld [vmem:[%s248 + $0x32] sm:$0xff]
        %v813 = vld [vmem:[%s248 + $0x3a] sm:$0xff]
        %v814 = vld [vmem:[%s248 + $0x42] sm:$0xff]
        %v815 = vld [vmem:[%s248 + $0x4a] sm:$0xff]
        %v816 = vld [vmem:[%s248 + $0x52] sm:$0xff]
        %v817 = vld [vmem:[%s248 + $0x5a] sm:$0xff]
        %v818 = vld [vmem:[%s248 + $0x62] sm:$0xff]
        %v819 = vld [vmem:[%s248 + $0x6a] sm:$0xff]
        %v820 = vld [vmem:[%s248 + $0x72] sm:$0xff]
        %v821 = vld [vmem:[%s248 + $0x7a] sm:$0xff]
        %v822 = vld [vmem:[%s248 + $0x82] sm:$0xff]
        %v823 = vld [vmem:[%s248 + $0x8a] sm:$0xff]
        %v824 = vld [vmem:[%s248 + $0x92] sm:$0xff]
        %v825 = vld [vmem:[%s248 + $0x9a] sm:$0xff]
        %v826 = vld [vmem:[%s248 + $0xa2] sm:$0xff]
        %v827 = vld [vmem:[%s248 + $0xaa] sm:$0xff]
        %v828 = vld [vmem:[%s248 + $0xb2] sm:$0xff]
        %v829 = vld [vmem:[%s248 + $0xba] sm:$0xff]
        %v830 = vld [vmem:[%s248 + $0xc2] sm:$0xff]
        %v831 = vld [vmem:[%s248 + $0xca] sm:$0xff]
        %v832 = vld [vmem:[%s248 + $0xd2] sm:$0xff]
        %v833 = vld [vmem:[%s248 + $0xda] sm:$0xff]
        %v834 = vld [vmem:[%s248 + $0xe2] sm:$0xff]
        %v835 = vld [vmem:[%s248 + $0xea] sm:$0xff]
        %v836 = vld [vmem:[%s248 + $0xf2] sm:$0xff]
        %v837 = vld [vmem:[%s248 + $0xfa] sm:$0xff]
        %v838 = vld [vmem:[%s248 + $0x102] sm:$0xff]
        %v839 = vld [vmem:[%s248 + $0x10a] sm:$0xff]
        %v840 = vld [vmem:[%s248 + $0x112] sm:$0xff]
        %v841 = vld [vmem:[%s248 + $0x11a] sm:$0xff]
        %v843 = vsel %vm339, %v806, 0
        %v846 = vsel %vm339, %v807, 0
        %v849 = vsel %vm339, %v808, 0
        %v852 = vsel %vm339, %v809, 0
        %v855 = vsel %vm339, %v810, 0
        %v858 = vsel %vm339, %v811, 0
        %v861 = vsel %vm339, %v812, 0
        %v864 = vsel %vm339, %v813, 0
        %v867 = vsel %vm339, %v814, 0
        %v870 = vsel %vm339, %v815, 0
        %v873 = vsel %vm339, %v816, 0
        %v876 = vsel %vm339, %v817, 0
        %v879 = vsel %vm339, %v818, 0
        %v882 = vsel %vm339, %v819, 0
        %v885 = vsel %vm339, %v820, 0
        %v888 = vsel %vm339, %v821, 0
        %v891 = vsel %vm339, %v822, 0
        %v894 = vsel %vm339, %v823, 0
        %v897 = vsel %vm339, %v824, 0
        %v900 = vsel %vm339, %v825, 0
        %v903 = vsel %vm339, %v826, 0
        %v906 = vsel %vm339, %v827, 0
        %v909 = vsel %vm339, %v828, 0
        %v912 = vsel %vm339, %v829, 0
        %v915 = vsel %vm339, %v830, 0
        %v918 = vsel %vm339, %v831, 0
        %v921 = vsel %vm339, %v832, 0
        %v924 = vsel %vm339, %v833, 0
        %v927 = vsel %vm339, %v834, 0
        %v930 = vsel %vm339, %v835, 0
        %v933 = vsel %vm339, %v836, 0
        %v936 = vsel %vm339, %v837, 0
        %v939 = vsel %vm339, %v838, 0
        %v942 = vsel %vm339, %v839, 0
        %v945 = vsel %vm339, %v840, 0
        %v948 = vsel %vm339, %v841, 0
        %950 = vmatpush.msra.mxu0 0.0
        %951 = vmatpush.msra.mxu0 0.0
        %952 = vmatpush.msra.mxu0 0.0
        %953 = vmatpush.msra.mxu0 0.0
        %954 = vmatpush.msra.mxu0 0.0
        %955 = vmatpush.msra.mxu0 0.0
        %956 = vmatpush.msra.mxu0 0.0
        %957 = vmatpush.msra.mxu0 0.0
        %958 = vmatpush.msra.mxu0 0.0
        %959 = vmatpush.msra.mxu0 0.0
        %960 = vmatpush.msra.mxu0 0.0
        %961 = vmatpush.msra.mxu0 0.0
        %962 = vmatpush.msra.mxu0 0.0
        %963 = vmatpush.msra.mxu0 0.0
        %964 = vmatpush.msra.mxu0 0.0
        %965 = vmatpush.msra.mxu0 %v254
        %966 = vmatmul.f32.gmra.mxu0 %v843
        %v967 = vpop.f32.mrf.mxu0
        %v968 = vadd.f32 0.0, %v967
        %969 = vmatmul.f32.gmra.mxu0 %v846
        %v970 = vpop.f32.mrf.mxu0
        %v971 = vadd.f32 0.0, %v970
        %972 = vmatmul.f32.gmra.mxu0 %v849
        %v973 = vpop.f32.mrf.mxu0
        %v974 = vadd.f32 0.0, %v973
        %975 = vmatmul.f32.gmra.mxu0 %v852
        %v976 = vpop.f32.mrf.mxu0
        %v977 = vadd.f32 0.0, %v976
        %978 = vmatmul.f32.gmra.mxu0 %v855
        %v979 = vpop.f32.mrf.mxu0
        %v980 = vadd.f32 0.0, %v979
        %981 = vmatmul.f32.gmra.mxu0 %v858
        %v982 = vpop.f32.mrf.mxu0
        %v983 = vadd.f32 0.0, %v982
        %984 = vmatmul.f32.gmra.mxu0 %v861
        %v985 = vpop.f32.mrf.mxu0
        %v986 = vadd.f32 0.0, %v985
        %987 = vmatmul.f32.gmra.mxu0 %v864
        %v988 = vpop.f32.mrf.mxu0
        %v989 = vadd.f32 0.0, %v988
        %990 = vmatmul.f32.gmra.mxu0 %v867
        %v991 = vpop.f32.mrf.mxu0
        %v992 = vadd.f32 0.0, %v991
        %993 = vmatmul.f32.gmra.mxu0 %v870
        %v994 = vpop.f32.mrf.mxu0
        %v995 = vadd.f32 0.0, %v994
        %996 = vmatmul.f32.gmra.mxu0 %v873
        %v997 = vpop.f32.mrf.mxu0
        %v998 = vadd.f32 0.0, %v997
        %999 = vmatmul.f32.gmra.mxu0 %v876
        %v1000 = vpop.f32.mrf.mxu0
        %v1001 = vadd.f32 0.0, %v1000
        %1002 = vmatmul.f32.gmra.mxu0 %v879
        %v1003 = vpop.f32.mrf.mxu0
        %v1004 = vadd.f32 0.0, %v1003
        %1005 = vmatmul.f32.gmra.mxu0 %v882
        %v1006 = vpop.f32.mrf.mxu0
        %v1007 = vadd.f32 0.0, %v1006
        %1008 = vmatmul.f32.gmra.mxu0 %v885
        %v1009 = vpop.f32.mrf.mxu0
        %v1010 = vadd.f32 0.0, %v1009
        %1011 = vmatmul.f32.gmra.mxu0 %v888
        %v1012 = vpop.f32.mrf.mxu0
        %v1013 = vadd.f32 0.0, %v1012
        %1014 = vmatmul.f32.gmra.mxu0 %v891
        %v1015 = vpop.f32.mrf.mxu0
        %v1016 = vadd.f32 0.0, %v1015
        %1017 = vmatmul.f32.gmra.mxu0 %v894
        %v1018 = vpop.f32.mrf.mxu0
        %v1019 = vadd.f32 0.0, %v1018
        %1020 = vmatmul.f32.gmra.mxu0 %v897
        %v1021 = vpop.f32.mrf.mxu0
        %v1022 = vadd.f32 0.0, %v1021
        %1023 = vmatmul.f32.gmra.mxu0 %v900
        %v1024 = vpop.f32.mrf.mxu0
        %v1025 = vadd.f32 0.0, %v1024
        %1026 = vmatmul.f32.gmra.mxu0 %v903
        %v1027 = vpop.f32.mrf.mxu0
        %v1028 = vadd.f32 0.0, %v1027
        %1029 = vmatmul.f32.gmra.mxu0 %v906
        %v1030 = vpop.f32.mrf.mxu0
        %v1031 = vadd.f32 0.0, %v1030
        %1032 = vmatmul.f32.gmra.mxu0 %v909
        %v1033 = vpop.f32.mrf.mxu0
        %v1034 = vadd.f32 0.0, %v1033
        %1035 = vmatmul.f32.gmra.mxu0 %v912
        %v1036 = vpop.f32.mrf.mxu0
        %v1037 = vadd.f32 0.0, %v1036
        %1038 = vmatmul.f32.gmra.mxu0 %v915
        %v1039 = vpop.f32.mrf.mxu0
        %v1040 = vadd.f32 0.0, %v1039
        %1041 = vmatmul.f32.gmra.mxu0 %v918
        %v1042 = vpop.f32.mrf.mxu0
        %v1043 = vadd.f32 0.0, %v1042
        %1044 = vmatmul.f32.gmra.mxu0 %v921
        %v1045 = vpop.f32.mrf.mxu0
        %v1046 = vadd.f32 0.0, %v1045
        %1047 = vmatmul.f32.gmra.mxu0 %v924
        %v1048 = vpop.f32.mrf.mxu0
        %v1049 = vadd.f32 0.0, %v1048
        %1050 = vmatmul.f32.gmra.mxu0 %v927
        %v1051 = vpop.f32.mrf.mxu0
        %v1052 = vadd.f32 0.0, %v1051
        %1053 = vmatmul.f32.gmra.mxu0 %v930
        %v1054 = vpop.f32.mrf.mxu0
        %v1055 = vadd.f32 0.0, %v1054
        %1056 = vmatmul.f32.gmra.mxu0 %v933
        %v1057 = vpop.f32.mrf.mxu0
        %v1058 = vadd.f32 0.0, %v1057
        %1059 = vmatmul.f32.gmra.mxu0 %v936
        %v1060 = vpop.f32.mrf.mxu0
        %v1061 = vadd.f32 0.0, %v1060
        %1062 = vmatmul.f32.gmra.mxu0 %v939
        %v1063 = vpop.f32.mrf.mxu0
        %v1064 = vadd.f32 0.0, %v1063
        %1065 = vmatmul.f32.gmra.mxu0 %v942
        %v1066 = vpop.f32.mrf.mxu0
        %v1067 = vadd.f32 0.0, %v1066
        %1068 = vmatmul.f32.gmra.mxu0 %v945
        %v1069 = vpop.f32.mrf.mxu0
        %v1070 = vadd.f32 0.0, %v1069
        %1071 = vmatmul.f32.gmra.mxu0 %v948
        %v1072 = vpop.f32.mrf.mxu0
        %v1073 = vadd.f32 0.0, %v1072
        %1074 = vdwg.mxu0
        %v1075 = vadd.f32 %v699, %v968
        %v1076 = vadd.f32 %v702, %v971
        %v1077 = vadd.f32 %v705, %v974
        %v1078 = vadd.f32 %v708, %v977
        %v1079 = vadd.f32 %v711, %v980
        %v1080 = vadd.f32 %v714, %v983
        %v1081 = vadd.f32 %v717, %v986
        %v1082 = vadd.f32 %v720, %v989
        %v1083 = vadd.f32 %v723, %v992
        %v1084 = vadd.f32 %v726, %v995
        %v1085 = vadd.f32 %v729, %v998
        %v1086 = vadd.f32 %v732, %v1001
        %v1087 = vadd.f32 %v735, %v1004
        %v1088 = vadd.f32 %v738, %v1007
        %v1089 = vadd.f32 %v741, %v1010
        %v1090 = vadd.f32 %v744, %v1013
        %v1091 = vadd.f32 %v747, %v1016
        %v1092 = vadd.f32 %v750, %v1019
        %v1093 = vadd.f32 %v753, %v1022
        %v1094 = vadd.f32 %v756, %v1025
        %v1095 = vadd.f32 %v759, %v1028
        %v1096 = vadd.f32 %v762, %v1031
        %v1097 = vadd.f32 %v765, %v1034
        %v1098 = vadd.f32 %v768, %v1037
        %v1099 = vadd.f32 %v771, %v1040
        %v1100 = vadd.f32 %v774, %v1043
        %v1101 = vadd.f32 %v777, %v1046
        %v1102 = vadd.f32 %v780, %v1049
        %v1103 = vadd.f32 %v783, %v1052
        %v1104 = vadd.f32 %v786, %v1055
        %v1105 = vadd.f32 %v789, %v1058
        %v1106 = vadd.f32 %v792, %v1061
        %v1107 = vadd.f32 %v795, %v1064
        %v1108 = vadd.f32 %v798, %v1067
        %v1109 = vadd.f32 %v801, %v1070
        %v1110 = vadd.f32 %v804, %v1073
        %v1111 = vld [vmem:[%s248 + $0x12] sm:$0xff]
        %v1112 = vld [vmem:[%s248 + $0x1a] sm:$0xff]
        %v1113 = vld [vmem:[%s248 + $0x22] sm:$0xff]
        %v1114 = vld [vmem:[%s248 + $0x2a] sm:$0xff]
        %v1115 = vld [vmem:[%s248 + $0x32] sm:$0xff]
        %v1116 = vld [vmem:[%s248 + $0x3a] sm:$0xff]
        %v1117 = vld [vmem:[%s248 + $0x42] sm:$0xff]
        %v1118 = vld [vmem:[%s248 + $0x4a] sm:$0xff]
        %v1119 = vld [vmem:[%s248 + $0x52] sm:$0xff]
        %v1120 = vld [vmem:[%s248 + $0x5a] sm:$0xff]
        %v1121 = vld [vmem:[%s248 + $0x62] sm:$0xff]
        %v1122 = vld [vmem:[%s248 + $0x6a] sm:$0xff]
        %v1123 = vld [vmem:[%s248 + $0x72] sm:$0xff]
        %v1124 = vld [vmem:[%s248 + $0x7a] sm:$0xff]
        %v1125 = vld [vmem:[%s248 + $0x82] sm:$0xff]
        %v1126 = vld [vmem:[%s248 + $0x8a] sm:$0xff]
        %v1127 = vld [vmem:[%s248 + $0x92] sm:$0xff]
        %v1128 = vld [vmem:[%s248 + $0x9a] sm:$0xff]
        %v1129 = vld [vmem:[%s248 + $0xa2] sm:$0xff]
        %v1130 = vld [vmem:[%s248 + $0xaa] sm:$0xff]
        %v1131 = vld [vmem:[%s248 + $0xb2] sm:$0xff]
        %v1132 = vld [vmem:[%s248 + $0xba] sm:$0xff]
        %v1133 = vld [vmem:[%s248 + $0xc2] sm:$0xff]
        %v1134 = vld [vmem:[%s248 + $0xca] sm:$0xff]
        %v1135 = vld [vmem:[%s248 + $0xd2] sm:$0xff]
        %v1136 = vld [vmem:[%s248 + $0xda] sm:$0xff]
        %v1137 = vld [vmem:[%s248 + $0xe2] sm:$0xff]
        %v1138 = vld [vmem:[%s248 + $0xea] sm:$0xff]
        %v1139 = vld [vmem:[%s248 + $0xf2] sm:$0xff]
        %v1140 = vld [vmem:[%s248 + $0xfa] sm:$0xff]
        %v1141 = vld [vmem:[%s248 + $0x102] sm:$0xff]
        %v1142 = vld [vmem:[%s248 + $0x10a] sm:$0xff]
        %v1143 = vld [vmem:[%s248 + $0x112] sm:$0xff]
        %v1144 = vld [vmem:[%s248 + $0x11a] sm:$0xff]
        %v1145 = vld [vmem:[%s248 + $0x122] sm:$0xff]
        %v1146 = vld [vmem:[%s248 + $0x12a] sm:$0xff]
        %v1148 = vsel %vm339, %v1111, 0
        %v1151 = vsel %vm339, %v1112, 0
        %v1154 = vsel %vm339, %v1113, 0
        %v1157 = vsel %vm339, %v1114, 0
        %v1160 = vsel %vm339, %v1115, 0
        %v1163 = vsel %vm339, %v1116, 0
        %v1166 = vsel %vm339, %v1117, 0
        %v1169 = vsel %vm339, %v1118, 0
        %v1172 = vsel %vm339, %v1119, 0
        %v1175 = vsel %vm339, %v1120, 0
        %v1178 = vsel %vm339, %v1121, 0
        %v1181 = vsel %vm339, %v1122, 0
        %v1184 = vsel %vm339, %v1123, 0
        %v1187 = vsel %vm339, %v1124, 0
        %v1190 = vsel %vm339, %v1125, 0
        %v1193 = vsel %vm339, %v1126, 0
        %v1196 = vsel %vm339, %v1127, 0
        %v1199 = vsel %vm339, %v1128, 0
        %v1202 = vsel %vm339, %v1129, 0
        %v1205 = vsel %vm339, %v1130, 0
        %v1208 = vsel %vm339, %v1131, 0
        %v1211 = vsel %vm339, %v1132, 0
        %v1214 = vsel %vm339, %v1133, 0
        %v1217 = vsel %vm339, %v1134, 0
        %v1220 = vsel %vm339, %v1135, 0
        %v1223 = vsel %vm339, %v1136, 0
        %v1226 = vsel %vm339, %v1137, 0
        %v1229 = vsel %vm339, %v1138, 0
        %v1232 = vsel %vm339, %v1139, 0
        %v1235 = vsel %vm339, %v1140, 0
        %v1238 = vsel %vm339, %v1141, 0
        %v1241 = vsel %vm339, %v1142, 0
        %v1244 = vsel %vm339, %v1143, 0
        %v1247 = vsel %vm339, %v1144, 0
        %v1250 = vsel %vm339, %v1145, 0
        %v1253 = vsel %vm339, %v1146, 0
        %1255 = vmatpush.msra.mxu0 0.0
        %1256 = vmatpush.msra.mxu0 0.0
        %1257 = vmatpush.msra.mxu0 0.0
        %1258 = vmatpush.msra.mxu0 0.0
        %1259 = vmatpush.msra.mxu0 0.0
        %1260 = vmatpush.msra.mxu0 0.0
        %1261 = vmatpush.msra.mxu0 0.0
        %1262 = vmatpush.msra.mxu0 0.0
        %1263 = vmatpush.msra.mxu0 0.0
        %1264 = vmatpush.msra.mxu0 0.0
        %1265 = vmatpush.msra.mxu0 0.0
        %1266 = vmatpush.msra.mxu0 0.0
        %1267 = vmatpush.msra.mxu0 0.0
        %1268 = vmatpush.msra.mxu0 0.0
        %1269 = vmatpush.msra.mxu0 0.0
        %1270 = vmatpush.msra.mxu0 %v256
        %1271 = vmatmul.f32.gmra.mxu0 %v1148
        %v1272 = vpop.f32.mrf.mxu0
        %v1273 = vadd.f32 0.0, %v1272
        %1274 = vmatmul.f32.gmra.mxu0 %v1151
        %v1275 = vpop.f32.mrf.mxu0
        %v1276 = vadd.f32 0.0, %v1275
        %1277 = vmatmul.f32.gmra.mxu0 %v1154
        %v1278 = vpop.f32.mrf.mxu0
        %v1279 = vadd.f32 0.0, %v1278
        %1280 = vmatmul.f32.gmra.mxu0 %v1157
        %v1281 = vpop.f32.mrf.mxu0
        %v1282 = vadd.f32 0.0, %v1281
        %1283 = vmatmul.f32.gmra.mxu0 %v1160
        %v1284 = vpop.f32.mrf.mxu0
        %v1285 = vadd.f32 0.0, %v1284
        %1286 = vmatmul.f32.gmra.mxu0 %v1163
        %v1287 = vpop.f32.mrf.mxu0
        %v1288 = vadd.f32 0.0, %v1287
        %1289 = vmatmul.f32.gmra.mxu0 %v1166
        %v1290 = vpop.f32.mrf.mxu0
        %v1291 = vadd.f32 0.0, %v1290
        %1292 = vmatmul.f32.gmra.mxu0 %v1169
        %v1293 = vpop.f32.mrf.mxu0
        %v1294 = vadd.f32 0.0, %v1293
        %1295 = vmatmul.f32.gmra.mxu0 %v1172
        %v1296 = vpop.f32.mrf.mxu0
        %v1297 = vadd.f32 0.0, %v1296
        %1298 = vmatmul.f32.gmra.mxu0 %v1175
        %v1299 = vpop.f32.mrf.mxu0
        %v1300 = vadd.f32 0.0, %v1299
        %1301 = vmatmul.f32.gmra.mxu0 %v1178
        %v1302 = vpop.f32.mrf.mxu0
        %v1303 = vadd.f32 0.0, %v1302
        %1304 = vmatmul.f32.gmra.mxu0 %v1181
        %v1305 = vpop.f32.mrf.mxu0
        %v1306 = vadd.f32 0.0, %v1305
        %1307 = vmatmul.f32.gmra.mxu0 %v1184
        %v1308 = vpop.f32.mrf.mxu0
        %v1309 = vadd.f32 0.0, %v1308
        %1310 = vmatmul.f32.gmra.mxu0 %v1187
        %v1311 = vpop.f32.mrf.mxu0
        %v1312 = vadd.f32 0.0, %v1311
        %1313 = vmatmul.f32.gmra.mxu0 %v1190
        %v1314 = vpop.f32.mrf.mxu0
        %v1315 = vadd.f32 0.0, %v1314
        %1316 = vmatmul.f32.gmra.mxu0 %v1193
        %v1317 = vpop.f32.mrf.mxu0
        %v1318 = vadd.f32 0.0, %v1317
        %1319 = vmatmul.f32.gmra.mxu0 %v1196
        %v1320 = vpop.f32.mrf.mxu0
        %v1321 = vadd.f32 0.0, %v1320
        %1322 = vmatmul.f32.gmra.mxu0 %v1199
        %v1323 = vpop.f32.mrf.mxu0
        %v1324 = vadd.f32 0.0, %v1323
        %1325 = vmatmul.f32.gmra.mxu0 %v1202
        %v1326 = vpop.f32.mrf.mxu0
        %v1327 = vadd.f32 0.0, %v1326
        %1328 = vmatmul.f32.gmra.mxu0 %v1205
        %v1329 = vpop.f32.mrf.mxu0
        %v1330 = vadd.f32 0.0, %v1329
        %1331 = vmatmul.f32.gmra.mxu0 %v1208
        %v1332 = vpop.f32.mrf.mxu0
        %v1333 = vadd.f32 0.0, %v1332
        %1334 = vmatmul.f32.gmra.mxu0 %v1211
        %v1335 = vpop.f32.mrf.mxu0
        %v1336 = vadd.f32 0.0, %v1335
        %1337 = vmatmul.f32.gmra.mxu0 %v1214
        %v1338 = vpop.f32.mrf.mxu0
        %v1339 = vadd.f32 0.0, %v1338
        %1340 = vmatmul.f32.gmra.mxu0 %v1217
        %v1341 = vpop.f32.mrf.mxu0
        %v1342 = vadd.f32 0.0, %v1341
        %1343 = vmatmul.f32.gmra.mxu0 %v1220
        %v1344 = vpop.f32.mrf.mxu0
        %v1345 = vadd.f32 0.0, %v1344
        %1346 = vmatmul.f32.gmra.mxu0 %v1223
        %v1347 = vpop.f32.mrf.mxu0
        %v1348 = vadd.f32 0.0, %v1347
        %1349 = vmatmul.f32.gmra.mxu0 %v1226
        %v1350 = vpop.f32.mrf.mxu0
        %v1351 = vadd.f32 0.0, %v1350
        %1352 = vmatmul.f32.gmra.mxu0 %v1229
        %v1353 = vpop.f32.mrf.mxu0
        %v1354 = vadd.f32 0.0, %v1353
        %1355 = vmatmul.f32.gmra.mxu0 %v1232
        %v1356 = vpop.f32.mrf.mxu0
        %v1357 = vadd.f32 0.0, %v1356
        %1358 = vmatmul.f32.gmra.mxu0 %v1235
        %v1359 = vpop.f32.mrf.mxu0
        %v1360 = vadd.f32 0.0, %v1359
        %1361 = vmatmul.f32.gmra.mxu0 %v1238
        %v1362 = vpop.f32.mrf.mxu0
        %v1363 = vadd.f32 0.0, %v1362
        %1364 = vmatmul.f32.gmra.mxu0 %v1241
        %v1365 = vpop.f32.mrf.mxu0
        %v1366 = vadd.f32 0.0, %v1365
        %1367 = vmatmul.f32.gmra.mxu0 %v1244
        %v1368 = vpop.f32.mrf.mxu0
        %v1369 = vadd.f32 0.0, %v1368
        %1370 = vmatmul.f32.gmra.mxu0 %v1247
        %v1371 = vpop.f32.mrf.mxu0
        %v1372 = vadd.f32 0.0, %v1371
        %1373 = vmatmul.f32.gmra.mxu0 %v1250
        %v1374 = vpop.f32.mrf.mxu0
        %v1375 = vadd.f32 0.0, %v1374
        %1376 = vmatmul.f32.gmra.mxu0 %v1253
        %v1377 = vpop.f32.mrf.mxu0
        %v1378 = vadd.f32 0.0, %v1377
        %1379 = vdwg.mxu0
        %v1380 = vadd.f32 %v1075, %v1273
        %v1381 = vadd.f32 %v1076, %v1276
        %v1382 = vadd.f32 %v1077, %v1279
        %v1383 = vadd.f32 %v1078, %v1282
        %v1384 = vadd.f32 %v1079, %v1285
        %v1385 = vadd.f32 %v1080, %v1288
        %v1386 = vadd.f32 %v1081, %v1291
        %v1387 = vadd.f32 %v1082, %v1294
        %v1388 = vadd.f32 %v1083, %v1297
        %v1389 = vadd.f32 %v1084, %v1300
        %v1390 = vadd.f32 %v1085, %v1303
        %v1391 = vadd.f32 %v1086, %v1306
        %v1392 = vadd.f32 %v1087, %v1309
        %v1393 = vadd.f32 %v1088, %v1312
        %v1394 = vadd.f32 %v1089, %v1315
        %v1395 = vadd.f32 %v1090, %v1318
        %v1396 = vadd.f32 %v1091, %v1321
        %v1397 = vadd.f32 %v1092, %v1324
        %v1398 = vadd.f32 %v1093, %v1327
        %v1399 = vadd.f32 %v1094, %v1330
        %v1400 = vadd.f32 %v1095, %v1333
        %v1401 = vadd.f32 %v1096, %v1336
        %v1402 = vadd.f32 %v1097, %v1339
        %v1403 = vadd.f32 %v1098, %v1342
        %v1404 = vadd.f32 %v1099, %v1345
        %v1405 = vadd.f32 %v1100, %v1348
        %v1406 = vadd.f32 %v1101, %v1351
        %v1407 = vadd.f32 %v1102, %v1354
        %v1408 = vadd.f32 %v1103, %v1357
        %v1409 = vadd.f32 %v1104, %v1360
        %v1410 = vadd.f32 %v1105, %v1363
        %v1411 = vadd.f32 %v1106, %v1366
        %v1412 = vadd.f32 %v1107, %v1369
        %v1413 = vadd.f32 %v1108, %v1372
        %v1414 = vadd.f32 %v1109, %v1375
        %v1415 = vadd.f32 %v1110, %v1378
        %v1416 = vld [vmem:[%s248 + $0x13] sm:$0xff]
        %v1417 = vld [vmem:[%s248 + $0x1b] sm:$0xff]
        %v1418 = vld [vmem:[%s248 + $0x23] sm:$0xff]
        %v1419 = vld [vmem:[%s248 + $0x2b] sm:$0xff]
        %v1420 = vld [vmem:[%s248 + $0x33] sm:$0xff]
        %v1421 = vld [vmem:[%s248 + $0x3b] sm:$0xff]
        %v1422 = vld [vmem:[%s248 + $0x43] sm:$0xff]
        %v1423 = vld [vmem:[%s248 + $0x4b] sm:$0xff]
        %v1424 = vld [vmem:[%s248 + $0x53] sm:$0xff]
        %v1425 = vld [vmem:[%s248 + $0x5b] sm:$0xff]
        %v1426 = vld [vmem:[%s248 + $0x63] sm:$0xff]
        %v1427 = vld [vmem:[%s248 + $0x6b] sm:$0xff]
        %v1428 = vld [vmem:[%s248 + $0x73] sm:$0xff]
        %v1429 = vld [vmem:[%s248 + $0x7b] sm:$0xff]
        %v1430 = vld [vmem:[%s248 + $0x83] sm:$0xff]
        %v1431 = vld [vmem:[%s248 + $0x8b] sm:$0xff]
        %v1432 = vld [vmem:[%s248 + $0x93] sm:$0xff]
        %v1433 = vld [vmem:[%s248 + $0x9b] sm:$0xff]
        %v1434 = vld [vmem:[%s248 + $0xa3] sm:$0xff]
        %v1435 = vld [vmem:[%s248 + $0xab] sm:$0xff]
        %v1436 = vld [vmem:[%s248 + $0xb3] sm:$0xff]
        %v1437 = vld [vmem:[%s248 + $0xbb] sm:$0xff]
        %v1438 = vld [vmem:[%s248 + $0xc3] sm:$0xff]
        %v1439 = vld [vmem:[%s248 + $0xcb] sm:$0xff]
        %v1440 = vld [vmem:[%s248 + $0xd3] sm:$0xff]
        %v1441 = vld [vmem:[%s248 + $0xdb] sm:$0xff]
        %v1442 = vld [vmem:[%s248 + $0xe3] sm:$0xff]
        %v1443 = vld [vmem:[%s248 + $0xeb] sm:$0xff]
        %v1444 = vld [vmem:[%s248 + $0xf3] sm:$0xff]
        %v1445 = vld [vmem:[%s248 + $0xfb] sm:$0xff]
        %v1446 = vld [vmem:[%s248 + $0x103] sm:$0xff]
        %v1447 = vld [vmem:[%s248 + $0x10b] sm:$0xff]
        %v1448 = vld [vmem:[%s248 + $0x113] sm:$0xff]
        %v1449 = vld [vmem:[%s248 + $0x11b] sm:$0xff]
        %v1450 = vld [vmem:[%s248 + $0x123] sm:$0xff]
        %v1451 = vld [vmem:[%s248 + $0x12b] sm:$0xff]
        %v1453 = vsel %vm339, %v1416, 0
        %v1456 = vsel %vm339, %v1417, 0
        %v1459 = vsel %vm339, %v1418, 0
        %v1462 = vsel %vm339, %v1419, 0
        %v1465 = vsel %vm339, %v1420, 0
        %v1468 = vsel %vm339, %v1421, 0
        %v1471 = vsel %vm339, %v1422, 0
        %v1474 = vsel %vm339, %v1423, 0
        %v1477 = vsel %vm339, %v1424, 0
        %v1480 = vsel %vm339, %v1425, 0
        %v1483 = vsel %vm339, %v1426, 0
        %v1486 = vsel %vm339, %v1427, 0
        %v1489 = vsel %vm339, %v1428, 0
        %v1492 = vsel %vm339, %v1429, 0
        %v1495 = vsel %vm339, %v1430, 0
        %v1498 = vsel %vm339, %v1431, 0
        %v1501 = vsel %vm339, %v1432, 0
        %v1504 = vsel %vm339, %v1433, 0
        %v1507 = vsel %vm339, %v1434, 0
        %v1510 = vsel %vm339, %v1435, 0
        %v1513 = vsel %vm339, %v1436, 0
        %v1516 = vsel %vm339, %v1437, 0
        %v1519 = vsel %vm339, %v1438, 0
        %v1522 = vsel %vm339, %v1439, 0
        %v1525 = vsel %vm339, %v1440, 0
        %v1528 = vsel %vm339, %v1441, 0
        %v1531 = vsel %vm339, %v1442, 0
        %v1534 = vsel %vm339, %v1443, 0
        %v1537 = vsel %vm339, %v1444, 0
        %v1540 = vsel %vm339, %v1445, 0
        %v1543 = vsel %vm339, %v1446, 0
        %v1546 = vsel %vm339, %v1447, 0
        %v1549 = vsel %vm339, %v1448, 0
        %v1552 = vsel %vm339, %v1449, 0
        %v1555 = vsel %vm339, %v1450, 0
        %v1558 = vsel %vm339, %v1451, 0
        %1560 = vmatpush.msra.mxu0 0.0
        %1561 = vmatpush.msra.mxu0 0.0
        %1562 = vmatpush.msra.mxu0 0.0
        %1563 = vmatpush.msra.mxu0 0.0
        %1564 = vmatpush.msra.mxu0 0.0
        %1565 = vmatpush.msra.mxu0 0.0
        %1566 = vmatpush.msra.mxu0 0.0
        %1567 = vmatpush.msra.mxu0 0.0
        %1568 = vmatpush.msra.mxu0 0.0
        %1569 = vmatpush.msra.mxu0 0.0
        %1570 = vmatpush.msra.mxu0 0.0
        %1571 = vmatpush.msra.mxu0 0.0
        %1572 = vmatpush.msra.mxu0 0.0
        %1573 = vmatpush.msra.mxu0 0.0
        %1574 = vmatpush.msra.mxu0 0.0
        %1575 = vmatpush.msra.mxu0 %v258
        %1576 = vmatmul.f32.gmra.mxu0 %v1453
        %v1577 = vpop.f32.mrf.mxu0
        %v1578 = vadd.f32 0.0, %v1577
        %1579 = vmatmul.f32.gmra.mxu0 %v1456
        %v1580 = vpop.f32.mrf.mxu0
        %v1581 = vadd.f32 0.0, %v1580
        %1582 = vmatmul.f32.gmra.mxu0 %v1459
        %v1583 = vpop.f32.mrf.mxu0
        %v1584 = vadd.f32 0.0, %v1583
        %1585 = vmatmul.f32.gmra.mxu0 %v1462
        %v1586 = vpop.f32.mrf.mxu0
        %v1587 = vadd.f32 0.0, %v1586
        %1588 = vmatmul.f32.gmra.mxu0 %v1465
        %v1589 = vpop.f32.mrf.mxu0
        %v1590 = vadd.f32 0.0, %v1589
        %1591 = vmatmul.f32.gmra.mxu0 %v1468
        %v1592 = vpop.f32.mrf.mxu0
        %v1593 = vadd.f32 0.0, %v1592
        %1594 = vmatmul.f32.gmra.mxu0 %v1471
        %v1595 = vpop.f32.mrf.mxu0
        %v1596 = vadd.f32 0.0, %v1595
        %1597 = vmatmul.f32.gmra.mxu0 %v1474
        %v1598 = vpop.f32.mrf.mxu0
        %v1599 = vadd.f32 0.0, %v1598
        %1600 = vmatmul.f32.gmra.mxu0 %v1477
        %v1601 = vpop.f32.mrf.mxu0
        %v1602 = vadd.f32 0.0, %v1601
        %1603 = vmatmul.f32.gmra.mxu0 %v1480
        %v1604 = vpop.f32.mrf.mxu0
        %v1605 = vadd.f32 0.0, %v1604
        %1606 = vmatmul.f32.gmra.mxu0 %v1483
        %v1607 = vpop.f32.mrf.mxu0
        %v1608 = vadd.f32 0.0, %v1607
        %1609 = vmatmul.f32.gmra.mxu0 %v1486
        %v1610 = vpop.f32.mrf.mxu0
        %v1611 = vadd.f32 0.0, %v1610
        %1612 = vmatmul.f32.gmra.mxu0 %v1489
        %v1613 = vpop.f32.mrf.mxu0
        %v1614 = vadd.f32 0.0, %v1613
        %1615 = vmatmul.f32.gmra.mxu0 %v1492
        %v1616 = vpop.f32.mrf.mxu0
        %v1617 = vadd.f32 0.0, %v1616
        %1618 = vmatmul.f32.gmra.mxu0 %v1495
        %v1619 = vpop.f32.mrf.mxu0
        %v1620 = vadd.f32 0.0, %v1619
        %1621 = vmatmul.f32.gmra.mxu0 %v1498
        %v1622 = vpop.f32.mrf.mxu0
        %v1623 = vadd.f32 0.0, %v1622
        %1624 = vmatmul.f32.gmra.mxu0 %v1501
        %v1625 = vpop.f32.mrf.mxu0
        %v1626 = vadd.f32 0.0, %v1625
        %1627 = vmatmul.f32.gmra.mxu0 %v1504
        %v1628 = vpop.f32.mrf.mxu0
        %v1629 = vadd.f32 0.0, %v1628
        %1630 = vmatmul.f32.gmra.mxu0 %v1507
        %v1631 = vpop.f32.mrf.mxu0
        %v1632 = vadd.f32 0.0, %v1631
        %1633 = vmatmul.f32.gmra.mxu0 %v1510
        %v1634 = vpop.f32.mrf.mxu0
        %v1635 = vadd.f32 0.0, %v1634
        %1636 = vmatmul.f32.gmra.mxu0 %v1513
        %v1637 = vpop.f32.mrf.mxu0
        %v1638 = vadd.f32 0.0, %v1637
        %1639 = vmatmul.f32.gmra.mxu0 %v1516
        %v1640 = vpop.f32.mrf.mxu0
        %v1641 = vadd.f32 0.0, %v1640
        %1642 = vmatmul.f32.gmra.mxu0 %v1519
        %v1643 = vpop.f32.mrf.mxu0
        %v1644 = vadd.f32 0.0, %v1643
        %1645 = vmatmul.f32.gmra.mxu0 %v1522
        %v1646 = vpop.f32.mrf.mxu0
        %v1647 = vadd.f32 0.0, %v1646
        %1648 = vmatmul.f32.gmra.mxu0 %v1525
        %v1649 = vpop.f32.mrf.mxu0
        %v1650 = vadd.f32 0.0, %v1649
        %1651 = vmatmul.f32.gmra.mxu0 %v1528
        %v1652 = vpop.f32.mrf.mxu0
        %v1653 = vadd.f32 0.0, %v1652
        %1654 = vmatmul.f32.gmra.mxu0 %v1531
        %v1655 = vpop.f32.mrf.mxu0
        %v1656 = vadd.f32 0.0, %v1655
        %1657 = vmatmul.f32.gmra.mxu0 %v1534
        %v1658 = vpop.f32.mrf.mxu0
        %v1659 = vadd.f32 0.0, %v1658
        %1660 = vmatmul.f32.gmra.mxu0 %v1537
        %v1661 = vpop.f32.mrf.mxu0
        %v1662 = vadd.f32 0.0, %v1661
        %1663 = vmatmul.f32.gmra.mxu0 %v1540
        %v1664 = vpop.f32.mrf.mxu0
        %v1665 = vadd.f32 0.0, %v1664
        %1666 = vmatmul.f32.gmra.mxu0 %v1543
        %v1667 = vpop.f32.mrf.mxu0
        %v1668 = vadd.f32 0.0, %v1667
        %1669 = vmatmul.f32.gmra.mxu0 %v1546
        %v1670 = vpop.f32.mrf.mxu0
        %v1671 = vadd.f32 0.0, %v1670
        %1672 = vmatmul.f32.gmra.mxu0 %v1549
        %v1673 = vpop.f32.mrf.mxu0
        %v1674 = vadd.f32 0.0, %v1673
        %1675 = vmatmul.f32.gmra.mxu0 %v1552
        %v1676 = vpop.f32.mrf.mxu0
        %v1677 = vadd.f32 0.0, %v1676
        %1678 = vmatmul.f32.gmra.mxu0 %v1555
        %v1679 = vpop.f32.mrf.mxu0
        %v1680 = vadd.f32 0.0, %v1679
        %1681 = vmatmul.f32.gmra.mxu0 %v1558
        %v1682 = vpop.f32.mrf.mxu0
        %v1683 = vadd.f32 0.0, %v1682
        %1684 = vdwg.mxu0
        %v1685 = vadd.f32 %v1380, %v1578
        %v1686 = vadd.f32 %v1381, %v1581
        %v1687 = vadd.f32 %v1382, %v1584
        %v1688 = vadd.f32 %v1383, %v1587
        %v1689 = vadd.f32 %v1384, %v1590
        %v1690 = vadd.f32 %v1385, %v1593
        %v1691 = vadd.f32 %v1386, %v1596
        %v1692 = vadd.f32 %v1387, %v1599
        %v1693 = vadd.f32 %v1388, %v1602
        %v1694 = vadd.f32 %v1389, %v1605
        %v1695 = vadd.f32 %v1390, %v1608
        %v1696 = vadd.f32 %v1391, %v1611
        %v1697 = vadd.f32 %v1392, %v1614
        %v1698 = vadd.f32 %v1393, %v1617
        %v1699 = vadd.f32 %v1394, %v1620
        %v1700 = vadd.f32 %v1395, %v1623
        %v1701 = vadd.f32 %v1396, %v1626
        %v1702 = vadd.f32 %v1397, %v1629
        %v1703 = vadd.f32 %v1398, %v1632
        %v1704 = vadd.f32 %v1399, %v1635
        %v1705 = vadd.f32 %v1400, %v1638
        %v1706 = vadd.f32 %v1401, %v1641
        %v1707 = vadd.f32 %v1402, %v1644
        %v1708 = vadd.f32 %v1403, %v1647
        %v1709 = vadd.f32 %v1404, %v1650
        %v1710 = vadd.f32 %v1405, %v1653
        %v1711 = vadd.f32 %v1406, %v1656
        %v1712 = vadd.f32 %v1407, %v1659
        %v1713 = vadd.f32 %v1408, %v1662
        %v1714 = vadd.f32 %v1409, %v1665
        %v1715 = vadd.f32 %v1410, %v1668
        %v1716 = vadd.f32 %v1411, %v1671
        %v1717 = vadd.f32 %v1412, %v1674
        %v1718 = vadd.f32 %v1413, %v1677
        %v1719 = vadd.f32 %v1414, %v1680
        %v1720 = vadd.f32 %v1415, %v1683
        %v1721 = vld [vmem:[%s248 + $0x14] sm:$0xff]
        %v1722 = vld [vmem:[%s248 + $0x1c] sm:$0xff]
        %v1723 = vld [vmem:[%s248 + $0x24] sm:$0xff]
        %v1724 = vld [vmem:[%s248 + $0x2c] sm:$0xff]
        %v1725 = vld [vmem:[%s248 + $0x34] sm:$0xff]
        %v1726 = vld [vmem:[%s248 + $0x3c] sm:$0xff]
        %v1727 = vld [vmem:[%s248 + $0x44] sm:$0xff]
        %v1728 = vld [vmem:[%s248 + $0x4c] sm:$0xff]
        %v1729 = vld [vmem:[%s248 + $0x54] sm:$0xff]
        %v1730 = vld [vmem:[%s248 + $0x5c] sm:$0xff]
        %v1731 = vld [vmem:[%s248 + $0x64] sm:$0xff]
        %v1732 = vld [vmem:[%s248 + $0x6c] sm:$0xff]
        %v1733 = vld [vmem:[%s248 + $0x74] sm:$0xff]
        %v1734 = vld [vmem:[%s248 + $0x7c] sm:$0xff]
        %v1735 = vld [vmem:[%s248 + $0x84] sm:$0xff]
        %v1736 = vld [vmem:[%s248 + $0x8c] sm:$0xff]
        %v1737 = vld [vmem:[%s248 + $0x94] sm:$0xff]
        %v1738 = vld [vmem:[%s248 + $0x9c] sm:$0xff]
        %v1739 = vld [vmem:[%s248 + $0xa4] sm:$0xff]
        %v1740 = vld [vmem:[%s248 + $0xac] sm:$0xff]
        %v1741 = vld [vmem:[%s248 + $0xb4] sm:$0xff]
        %v1742 = vld [vmem:[%s248 + $0xbc] sm:$0xff]
        %v1743 = vld [vmem:[%s248 + $0xc4] sm:$0xff]
        %v1744 = vld [vmem:[%s248 + $0xcc] sm:$0xff]
        %v1745 = vld [vmem:[%s248 + $0xd4] sm:$0xff]
        %v1746 = vld [vmem:[%s248 + $0xdc] sm:$0xff]
        %v1747 = vld [vmem:[%s248 + $0xe4] sm:$0xff]
        %v1748 = vld [vmem:[%s248 + $0xec] sm:$0xff]
        %v1749 = vld [vmem:[%s248 + $0xf4] sm:$0xff]
        %v1750 = vld [vmem:[%s248 + $0xfc] sm:$0xff]
        %v1751 = vld [vmem:[%s248 + $0x104] sm:$0xff]
        %v1752 = vld [vmem:[%s248 + $0x10c] sm:$0xff]
        %v1753 = vld [vmem:[%s248 + $0x114] sm:$0xff]
        %v1754 = vld [vmem:[%s248 + $0x11c] sm:$0xff]
        %v1755 = vld [vmem:[%s248 + $0x124] sm:$0xff]
        %v1756 = vld [vmem:[%s248 + $0x12c] sm:$0xff]
        %v1758 = vsel %vm339, %v1721, 0
        %v1761 = vsel %vm339, %v1722, 0
        %v1764 = vsel %vm339, %v1723, 0
        %v1767 = vsel %vm339, %v1724, 0
        %v1770 = vsel %vm339, %v1725, 0
        %v1773 = vsel %vm339, %v1726, 0
        %v1776 = vsel %vm339, %v1727, 0
        %v1779 = vsel %vm339, %v1728, 0
        %v1782 = vsel %vm339, %v1729, 0
        %v1785 = vsel %vm339, %v1730, 0
        %v1788 = vsel %vm339, %v1731, 0
        %v1791 = vsel %vm339, %v1732, 0
        %v1794 = vsel %vm339, %v1733, 0
        %v1797 = vsel %vm339, %v1734, 0
        %v1800 = vsel %vm339, %v1735, 0
        %v1803 = vsel %vm339, %v1736, 0
        %v1806 = vsel %vm339, %v1737, 0
        %v1809 = vsel %vm339, %v1738, 0
        %v1812 = vsel %vm339, %v1739, 0
        %v1815 = vsel %vm339, %v1740, 0
        %v1818 = vsel %vm339, %v1741, 0
        %v1821 = vsel %vm339, %v1742, 0
        %v1824 = vsel %vm339, %v1743, 0
        %v1827 = vsel %vm339, %v1744, 0
        %v1830 = vsel %vm339, %v1745, 0
        %v1833 = vsel %vm339, %v1746, 0
        %v1836 = vsel %vm339, %v1747, 0
        %v1839 = vsel %vm339, %v1748, 0
        %v1842 = vsel %vm339, %v1749, 0
        %v1845 = vsel %vm339, %v1750, 0
        %v1848 = vsel %vm339, %v1751, 0
        %v1851 = vsel %vm339, %v1752, 0
        %v1854 = vsel %vm339, %v1753, 0
        %v1857 = vsel %vm339, %v1754, 0
        %v1860 = vsel %vm339, %v1755, 0
        %v1863 = vsel %vm339, %v1756, 0
        %1865 = vmatpush.msra.mxu0 0.0
        %1866 = vmatpush.msra.mxu0 0.0
        %1867 = vmatpush.msra.mxu0 0.0
        %1868 = vmatpush.msra.mxu0 0.0
        %1869 = vmatpush.msra.mxu0 0.0
        %1870 = vmatpush.msra.mxu0 0.0
        %1871 = vmatpush.msra.mxu0 0.0
        %1872 = vmatpush.msra.mxu0 0.0
        %1873 = vmatpush.msra.mxu0 0.0
        %1874 = vmatpush.msra.mxu0 0.0
        %1875 = vmatpush.msra.mxu0 0.0
        %1876 = vmatpush.msra.mxu0 0.0
        %1877 = vmatpush.msra.mxu0 0.0
        %1878 = vmatpush.msra.mxu0 0.0
        %1879 = vmatpush.msra.mxu0 0.0
        %1880 = vmatpush.msra.mxu0 %v260
        %1881 = vmatmul.f32.gmra.mxu0 %v1758
        %v1882 = vpop.f32.mrf.mxu0
        %v1883 = vadd.f32 0.0, %v1882
        %1884 = vmatmul.f32.gmra.mxu0 %v1761
        %v1885 = vpop.f32.mrf.mxu0
        %v1886 = vadd.f32 0.0, %v1885
        %1887 = vmatmul.f32.gmra.mxu0 %v1764
        %v1888 = vpop.f32.mrf.mxu0
        %v1889 = vadd.f32 0.0, %v1888
        %1890 = vmatmul.f32.gmra.mxu0 %v1767
        %v1891 = vpop.f32.mrf.mxu0
        %v1892 = vadd.f32 0.0, %v1891
        %1893 = vmatmul.f32.gmra.mxu0 %v1770
        %v1894 = vpop.f32.mrf.mxu0
        %v1895 = vadd.f32 0.0, %v1894
        %1896 = vmatmul.f32.gmra.mxu0 %v1773
        %v1897 = vpop.f32.mrf.mxu0
        %v1898 = vadd.f32 0.0, %v1897
        %1899 = vmatmul.f32.gmra.mxu0 %v1776
        %v1900 = vpop.f32.mrf.mxu0
        %v1901 = vadd.f32 0.0, %v1900
        %1902 = vmatmul.f32.gmra.mxu0 %v1779
        %v1903 = vpop.f32.mrf.mxu0
        %v1904 = vadd.f32 0.0, %v1903
        %1905 = vmatmul.f32.gmra.mxu0 %v1782
        %v1906 = vpop.f32.mrf.mxu0
        %v1907 = vadd.f32 0.0, %v1906
        %1908 = vmatmul.f32.gmra.mxu0 %v1785
        %v1909 = vpop.f32.mrf.mxu0
        %v1910 = vadd.f32 0.0, %v1909
        %1911 = vmatmul.f32.gmra.mxu0 %v1788
        %v1912 = vpop.f32.mrf.mxu0
        %v1913 = vadd.f32 0.0, %v1912
        %1914 = vmatmul.f32.gmra.mxu0 %v1791
        %v1915 = vpop.f32.mrf.mxu0
        %v1916 = vadd.f32 0.0, %v1915
        %1917 = vmatmul.f32.gmra.mxu0 %v1794
        %v1918 = vpop.f32.mrf.mxu0
        %v1919 = vadd.f32 0.0, %v1918
        %1920 = vmatmul.f32.gmra.mxu0 %v1797
        %v1921 = vpop.f32.mrf.mxu0
        %v1922 = vadd.f32 0.0, %v1921
        %1923 = vmatmul.f32.gmra.mxu0 %v1800
        %v1924 = vpop.f32.mrf.mxu0
        %v1925 = vadd.f32 0.0, %v1924
        %1926 = vmatmul.f32.gmra.mxu0 %v1803
        %v1927 = vpop.f32.mrf.mxu0
        %v1928 = vadd.f32 0.0, %v1927
        %1929 = vmatmul.f32.gmra.mxu0 %v1806
        %v1930 = vpop.f32.mrf.mxu0
        %v1931 = vadd.f32 0.0, %v1930
        %1932 = vmatmul.f32.gmra.mxu0 %v1809
        %v1933 = vpop.f32.mrf.mxu0
        %v1934 = vadd.f32 0.0, %v1933
        %1935 = vmatmul.f32.gmra.mxu0 %v1812
        %v1936 = vpop.f32.mrf.mxu0
        %v1937 = vadd.f32 0.0, %v1936
        %1938 = vmatmul.f32.gmra.mxu0 %v1815
        %v1939 = vpop.f32.mrf.mxu0
        %v1940 = vadd.f32 0.0, %v1939
        %1941 = vmatmul.f32.gmra.mxu0 %v1818
        %v1942 = vpop.f32.mrf.mxu0
        %v1943 = vadd.f32 0.0, %v1942
        %1944 = vmatmul.f32.gmra.mxu0 %v1821
        %v1945 = vpop.f32.mrf.mxu0
        %v1946 = vadd.f32 0.0, %v1945
        %1947 = vmatmul.f32.gmra.mxu0 %v1824
        %v1948 = vpop.f32.mrf.mxu0
        %v1949 = vadd.f32 0.0, %v1948
        %1950 = vmatmul.f32.gmra.mxu0 %v1827
        %v1951 = vpop.f32.mrf.mxu0
        %v1952 = vadd.f32 0.0, %v1951
        %1953 = vmatmul.f32.gmra.mxu0 %v1830
        %v1954 = vpop.f32.mrf.mxu0
        %v1955 = vadd.f32 0.0, %v1954
        %1956 = vmatmul.f32.gmra.mxu0 %v1833
        %v1957 = vpop.f32.mrf.mxu0
        %v1958 = vadd.f32 0.0, %v1957
        %1959 = vmatmul.f32.gmra.mxu0 %v1836
        %v1960 = vpop.f32.mrf.mxu0
        %v1961 = vadd.f32 0.0, %v1960
        %1962 = vmatmul.f32.gmra.mxu0 %v1839
        %v1963 = vpop.f32.mrf.mxu0
        %v1964 = vadd.f32 0.0, %v1963
        %1965 = vmatmul.f32.gmra.mxu0 %v1842
        %v1966 = vpop.f32.mrf.mxu0
        %v1967 = vadd.f32 0.0, %v1966
        %1968 = vmatmul.f32.gmra.mxu0 %v1845
        %v1969 = vpop.f32.mrf.mxu0
        %v1970 = vadd.f32 0.0, %v1969
        %1971 = vmatmul.f32.gmra.mxu0 %v1848
        %v1972 = vpop.f32.mrf.mxu0
        %v1973 = vadd.f32 0.0, %v1972
        %1974 = vmatmul.f32.gmra.mxu0 %v1851
        %v1975 = vpop.f32.mrf.mxu0
        %v1976 = vadd.f32 0.0, %v1975
        %1977 = vmatmul.f32.gmra.mxu0 %v1854
        %v1978 = vpop.f32.mrf.mxu0
        %v1979 = vadd.f32 0.0, %v1978
        %1980 = vmatmul.f32.gmra.mxu0 %v1857
        %v1981 = vpop.f32.mrf.mxu0
        %v1982 = vadd.f32 0.0, %v1981
        %1983 = vmatmul.f32.gmra.mxu0 %v1860
        %v1984 = vpop.f32.mrf.mxu0
        %v1985 = vadd.f32 0.0, %v1984
        %1986 = vmatmul.f32.gmra.mxu0 %v1863
        %v1987 = vpop.f32.mrf.mxu0
        %v1988 = vadd.f32 0.0, %v1987
        %1989 = vdwg.mxu0
        %v1990 = vadd.f32 %v1685, %v1883
        %v1991 = vadd.f32 %v1686, %v1886
        %v1992 = vadd.f32 %v1687, %v1889
        %v1993 = vadd.f32 %v1688, %v1892
        %v1994 = vadd.f32 %v1689, %v1895
        %v1995 = vadd.f32 %v1690, %v1898
        %v1996 = vadd.f32 %v1691, %v1901
        %v1997 = vadd.f32 %v1692, %v1904
        %v1998 = vadd.f32 %v1693, %v1907
        %v1999 = vadd.f32 %v1694, %v1910
        %v2000 = vadd.f32 %v1695, %v1913
        %v2001 = vadd.f32 %v1696, %v1916
        %v2002 = vadd.f32 %v1697, %v1919
        %v2003 = vadd.f32 %v1698, %v1922
        %v2004 = vadd.f32 %v1699, %v1925
        %v2005 = vadd.f32 %v1700, %v1928
        %v2006 = vadd.f32 %v1701, %v1931
        %v2007 = vadd.f32 %v1702, %v1934
        %v2008 = vadd.f32 %v1703, %v1937
        %v2009 = vadd.f32 %v1704, %v1940
        %v2010 = vadd.f32 %v1705, %v1943
        %v2011 = vadd.f32 %v1706, %v1946
        %v2012 = vadd.f32 %v1707, %v1949
        %v2013 = vadd.f32 %v1708, %v1952
        %v2014 = vadd.f32 %v1709, %v1955
        %v2015 = vadd.f32 %v1710, %v1958
        %v2016 = vadd.f32 %v1711, %v1961
        %v2017 = vadd.f32 %v1712, %v1964
        %v2018 = vadd.f32 %v1713, %v1967
        %v2019 = vadd.f32 %v1714, %v1970
        %v2020 = vadd.f32 %v1715, %v1973
        %v2021 = vadd.f32 %v1716, %v1976
        %v2022 = vadd.f32 %v1717, %v1979
        %v2023 = vadd.f32 %v1718, %v1982
        %v2024 = vadd.f32 %v1719, %v1985
        %v2025 = vadd.f32 %v1720, %v1988
        %v2026 = vld [vmem:[%s248 + $0x24] sm:$0xff]
        %v2027 = vld [vmem:[%s248 + $0x2c] sm:$0xff]
        %v2028 = vld [vmem:[%s248 + $0x34] sm:$0xff]
        %v2029 = vld [vmem:[%s248 + $0x3c] sm:$0xff]
        %v2030 = vld [vmem:[%s248 + $0x44] sm:$0xff]
        %v2031 = vld [vmem:[%s248 + $0x4c] sm:$0xff]
        %v2032 = vld [vmem:[%s248 + $0x54] sm:$0xff]
        %v2033 = vld [vmem:[%s248 + $0x5c] sm:$0xff]
        %v2034 = vld [vmem:[%s248 + $0x64] sm:$0xff]
        %v2035 = vld [vmem:[%s248 + $0x6c] sm:$0xff]
        %v2036 = vld [vmem:[%s248 + $0x74] sm:$0xff]
        %v2037 = vld [vmem:[%s248 + $0x7c] sm:$0xff]
        %v2038 = vld [vmem:[%s248 + $0x84] sm:$0xff]
        %v2039 = vld [vmem:[%s248 + $0x8c] sm:$0xff]
        %v2040 = vld [vmem:[%s248 + $0x94] sm:$0xff]
        %v2041 = vld [vmem:[%s248 + $0x9c] sm:$0xff]
        %v2042 = vld [vmem:[%s248 + $0xa4] sm:$0xff]
        %v2043 = vld [vmem:[%s248 + $0xac] sm:$0xff]
        %v2044 = vld [vmem:[%s248 + $0xb4] sm:$0xff]
        %v2045 = vld [vmem:[%s248 + $0xbc] sm:$0xff]
        %v2046 = vld [vmem:[%s248 + $0xc4] sm:$0xff]
        %v2047 = vld [vmem:[%s248 + $0xcc] sm:$0xff]
        %v2048 = vld [vmem:[%s248 + $0xd4] sm:$0xff]
        %v2049 = vld [vmem:[%s248 + $0xdc] sm:$0xff]
        %v2050 = vld [vmem:[%s248 + $0xe4] sm:$0xff]
        %v2051 = vld [vmem:[%s248 + $0xec] sm:$0xff]
        %v2052 = vld [vmem:[%s248 + $0xf4] sm:$0xff]
        %v2053 = vld [vmem:[%s248 + $0xfc] sm:$0xff]
        %v2054 = vld [vmem:[%s248 + $0x104] sm:$0xff]
        %v2055 = vld [vmem:[%s248 + $0x10c] sm:$0xff]
        %v2056 = vld [vmem:[%s248 + $0x114] sm:$0xff]
        %v2057 = vld [vmem:[%s248 + $0x11c] sm:$0xff]
        %v2058 = vld [vmem:[%s248 + $0x124] sm:$0xff]
        %v2059 = vld [vmem:[%s248 + $0x12c] sm:$0xff]
        %v2060 = vld [vmem:[%s248 + $0x134] sm:$0xff]
        %v2061 = vld [vmem:[%s248 + $0x13c] sm:$0xff]
        %v2063 = vsel %vm339, %v2026, 0
        %v2066 = vsel %vm339, %v2027, 0
        %v2069 = vsel %vm339, %v2028, 0
        %v2072 = vsel %vm339, %v2029, 0
        %v2075 = vsel %vm339, %v2030, 0
        %v2078 = vsel %vm339, %v2031, 0
        %v2081 = vsel %vm339, %v2032, 0
        %v2084 = vsel %vm339, %v2033, 0
        %v2087 = vsel %vm339, %v2034, 0
        %v2090 = vsel %vm339, %v2035, 0
        %v2093 = vsel %vm339, %v2036, 0
        %v2096 = vsel %vm339, %v2037, 0
        %v2099 = vsel %vm339, %v2038, 0
        %v2102 = vsel %vm339, %v2039, 0
        %v2105 = vsel %vm339, %v2040, 0
        %v2108 = vsel %vm339, %v2041, 0
        %v2111 = vsel %vm339, %v2042, 0
        %v2114 = vsel %vm339, %v2043, 0
        %v2117 = vsel %vm339, %v2044, 0
        %v2120 = vsel %vm339, %v2045, 0
        %v2123 = vsel %vm339, %v2046, 0
        %v2126 = vsel %vm339, %v2047, 0
        %v2129 = vsel %vm339, %v2048, 0
        %v2132 = vsel %vm339, %v2049, 0
        %v2135 = vsel %vm339, %v2050, 0
        %v2138 = vsel %vm339, %v2051, 0
        %v2141 = vsel %vm339, %v2052, 0
        %v2144 = vsel %vm339, %v2053, 0
        %v2147 = vsel %vm339, %v2054, 0
        %v2150 = vsel %vm339, %v2055, 0
        %v2153 = vsel %vm339, %v2056, 0
        %v2156 = vsel %vm339, %v2057, 0
        %v2159 = vsel %vm339, %v2058, 0
        %v2162 = vsel %vm339, %v2059, 0
        %v2165 = vsel %vm339, %v2060, 0
        %v2168 = vsel %vm339, %v2061, 0
        %2170 = vmatpush.msra.mxu0 0.0
        %2171 = vmatpush.msra.mxu0 0.0
        %2172 = vmatpush.msra.mxu0 0.0
        %2173 = vmatpush.msra.mxu0 0.0
        %2174 = vmatpush.msra.mxu0 0.0
        %2175 = vmatpush.msra.mxu0 0.0
        %2176 = vmatpush.msra.mxu0 0.0
        %2177 = vmatpush.msra.mxu0 0.0
        %2178 = vmatpush.msra.mxu0 0.0
        %2179 = vmatpush.msra.mxu0 0.0
        %2180 = vmatpush.msra.mxu0 0.0
        %2181 = vmatpush.msra.mxu0 0.0
        %2182 = vmatpush.msra.mxu0 0.0
        %2183 = vmatpush.msra.mxu0 0.0
        %2184 = vmatpush.msra.mxu0 0.0
        %2185 = vmatpush.msra.mxu0 %v262
        %2186 = vmatmul.f32.gmra.mxu0 %v2063
        %v2187 = vpop.f32.mrf.mxu0
        %v2188 = vadd.f32 0.0, %v2187
        %2189 = vmatmul.f32.gmra.mxu0 %v2066
        %v2190 = vpop.f32.mrf.mxu0
        %v2191 = vadd.f32 0.0, %v2190
        %2192 = vmatmul.f32.gmra.mxu0 %v2069
        %v2193 = vpop.f32.mrf.mxu0
        %v2194 = vadd.f32 0.0, %v2193
        %2195 = vmatmul.f32.gmra.mxu0 %v2072
        %v2196 = vpop.f32.mrf.mxu0
        %v2197 = vadd.f32 0.0, %v2196
        %2198 = vmatmul.f32.gmra.mxu0 %v2075
        %v2199 = vpop.f32.mrf.mxu0
        %v2200 = vadd.f32 0.0, %v2199
        %2201 = vmatmul.f32.gmra.mxu0 %v2078
        %v2202 = vpop.f32.mrf.mxu0
        %v2203 = vadd.f32 0.0, %v2202
        %2204 = vmatmul.f32.gmra.mxu0 %v2081
        %v2205 = vpop.f32.mrf.mxu0
        %v2206 = vadd.f32 0.0, %v2205
        %2207 = vmatmul.f32.gmra.mxu0 %v2084
        %v2208 = vpop.f32.mrf.mxu0
        %v2209 = vadd.f32 0.0, %v2208
        %2210 = vmatmul.f32.gmra.mxu0 %v2087
        %v2211 = vpop.f32.mrf.mxu0
        %v2212 = vadd.f32 0.0, %v2211
        %2213 = vmatmul.f32.gmra.mxu0 %v2090
        %v2214 = vpop.f32.mrf.mxu0
        %v2215 = vadd.f32 0.0, %v2214
        %2216 = vmatmul.f32.gmra.mxu0 %v2093
        %v2217 = vpop.f32.mrf.mxu0
        %v2218 = vadd.f32 0.0, %v2217
        %2219 = vmatmul.f32.gmra.mxu0 %v2096
        %v2220 = vpop.f32.mrf.mxu0
        %v2221 = vadd.f32 0.0, %v2220
        %2222 = vmatmul.f32.gmra.mxu0 %v2099
        %v2223 = vpop.f32.mrf.mxu0
        %v2224 = vadd.f32 0.0, %v2223
        %2225 = vmatmul.f32.gmra.mxu0 %v2102
        %v2226 = vpop.f32.mrf.mxu0
        %v2227 = vadd.f32 0.0, %v2226
        %2228 = vmatmul.f32.gmra.mxu0 %v2105
        %v2229 = vpop.f32.mrf.mxu0
        %v2230 = vadd.f32 0.0, %v2229
        %2231 = vmatmul.f32.gmra.mxu0 %v2108
        %v2232 = vpop.f32.mrf.mxu0
        %v2233 = vadd.f32 0.0, %v2232
        %2234 = vmatmul.f32.gmra.mxu0 %v2111
        %v2235 = vpop.f32.mrf.mxu0
        %v2236 = vadd.f32 0.0, %v2235
        %2237 = vmatmul.f32.gmra.mxu0 %v2114
        %v2238 = vpop.f32.mrf.mxu0
        %v2239 = vadd.f32 0.0, %v2238
        %2240 = vmatmul.f32.gmra.mxu0 %v2117
        %v2241 = vpop.f32.mrf.mxu0
        %v2242 = vadd.f32 0.0, %v2241
        %2243 = vmatmul.f32.gmra.mxu0 %v2120
        %v2244 = vpop.f32.mrf.mxu0
        %v2245 = vadd.f32 0.0, %v2244
        %2246 = vmatmul.f32.gmra.mxu0 %v2123
        %v2247 = vpop.f32.mrf.mxu0
        %v2248 = vadd.f32 0.0, %v2247
        %2249 = vmatmul.f32.gmra.mxu0 %v2126
        %v2250 = vpop.f32.mrf.mxu0
        %v2251 = vadd.f32 0.0, %v2250
        %2252 = vmatmul.f32.gmra.mxu0 %v2129
        %v2253 = vpop.f32.mrf.mxu0
        %v2254 = vadd.f32 0.0, %v2253
        %2255 = vmatmul.f32.gmra.mxu0 %v2132
        %v2256 = vpop.f32.mrf.mxu0
        %v2257 = vadd.f32 0.0, %v2256
        %2258 = vmatmul.f32.gmra.mxu0 %v2135
        %v2259 = vpop.f32.mrf.mxu0
        %v2260 = vadd.f32 0.0, %v2259
        %2261 = vmatmul.f32.gmra.mxu0 %v2138
        %v2262 = vpop.f32.mrf.mxu0
        %v2263 = vadd.f32 0.0, %v2262
        %2264 = vmatmul.f32.gmra.mxu0 %v2141
        %v2265 = vpop.f32.mrf.mxu0
        %v2266 = vadd.f32 0.0, %v2265
        %2267 = vmatmul.f32.gmra.mxu0 %v2144
        %v2268 = vpop.f32.mrf.mxu0
        %v2269 = vadd.f32 0.0, %v2268
        %2270 = vmatmul.f32.gmra.mxu0 %v2147
        %v2271 = vpop.f32.mrf.mxu0
        %v2272 = vadd.f32 0.0, %v2271
        %2273 = vmatmul.f32.gmra.mxu0 %v2150
        %v2274 = vpop.f32.mrf.mxu0
        %v2275 = vadd.f32 0.0, %v2274
        %2276 = vmatmul.f32.gmra.mxu0 %v2153
        %v2277 = vpop.f32.mrf.mxu0
        %v2278 = vadd.f32 0.0, %v2277
        %2279 = vmatmul.f32.gmra.mxu0 %v2156
        %v2280 = vpop.f32.mrf.mxu0
        %v2281 = vadd.f32 0.0, %v2280
        %2282 = vmatmul.f32.gmra.mxu0 %v2159
        %v2283 = vpop.f32.mrf.mxu0
        %v2284 = vadd.f32 0.0, %v2283
        %2285 = vmatmul.f32.gmra.mxu0 %v2162
        %v2286 = vpop.f32.mrf.mxu0
        %v2287 = vadd.f32 0.0, %v2286
        %2288 = vmatmul.f32.gmra.mxu0 %v2165
        %v2289 = vpop.f32.mrf.mxu0
        %v2290 = vadd.f32 0.0, %v2289
        %2291 = vmatmul.f32.gmra.mxu0 %v2168
        %v2292 = vpop.f32.mrf.mxu0
        %v2293 = vadd.f32 0.0, %v2292
        %2294 = vdwg.mxu0
        %v2295 = vadd.f32 %v1990, %v2188
        %v2296 = vadd.f32 %v1991, %v2191
        %v2297 = vadd.f32 %v1992, %v2194
        %v2298 = vadd.f32 %v1993, %v2197
        %v2299 = vadd.f32 %v1994, %v2200
        %v2300 = vadd.f32 %v1995, %v2203
        %v2301 = vadd.f32 %v1996, %v2206
        %v2302 = vadd.f32 %v1997, %v2209
        %v2303 = vadd.f32 %v1998, %v2212
        %v2304 = vadd.f32 %v1999, %v2215
        %v2305 = vadd.f32 %v2000, %v2218
        %v2306 = vadd.f32 %v2001, %v2221
        %v2307 = vadd.f32 %v2002, %v2224
        %v2308 = vadd.f32 %v2003, %v2227
        %v2309 = vadd.f32 %v2004, %v2230
        %v2310 = vadd.f32 %v2005, %v2233
        %v2311 = vadd.f32 %v2006, %v2236
        %v2312 = vadd.f32 %v2007, %v2239
        %v2313 = vadd.f32 %v2008, %v2242
        %v2314 = vadd.f32 %v2009, %v2245
        %v2315 = vadd.f32 %v2010, %v2248
        %v2316 = vadd.f32 %v2011, %v2251
        %v2317 = vadd.f32 %v2012, %v2254
        %v2318 = vadd.f32 %v2013, %v2257
        %v2319 = vadd.f32 %v2014, %v2260
        %v2320 = vadd.f32 %v2015, %v2263
        %v2321 = vadd.f32 %v2016, %v2266
        %v2322 = vadd.f32 %v2017, %v2269
        %v2323 = vadd.f32 %v2018, %v2272
        %v2324 = vadd.f32 %v2019, %v2275
        %v2325 = vadd.f32 %v2020, %v2278
        %v2326 = vadd.f32 %v2021, %v2281
        %v2327 = vadd.f32 %v2022, %v2284
        %v2328 = vadd.f32 %v2023, %v2287
        %v2329 = vadd.f32 %v2024, %v2290
        %v2330 = vadd.f32 %v2025, %v2293
        %v2331 = vld [vmem:[%s248 + $0x25] sm:$0xff]
        %v2332 = vld [vmem:[%s248 + $0x2d] sm:$0xff]
        %v2333 = vld [vmem:[%s248 + $0x35] sm:$0xff]
        %v2334 = vld [vmem:[%s248 + $0x3d] sm:$0xff]
        %v2335 = vld [vmem:[%s248 + $0x45] sm:$0xff]
        %v2336 = vld [vmem:[%s248 + $0x4d] sm:$0xff]
        %v2337 = vld [vmem:[%s248 + $0x55] sm:$0xff]
        %v2338 = vld [vmem:[%s248 + $0x5d] sm:$0xff]
        %v2339 = vld [vmem:[%s248 + $0x65] sm:$0xff]
        %v2340 = vld [vmem:[%s248 + $0x6d] sm:$0xff]
        %v2341 = vld [vmem:[%s248 + $0x75] sm:$0xff]
        %v2342 = vld [vmem:[%s248 + $0x7d] sm:$0xff]
        %v2343 = vld [vmem:[%s248 + $0x85] sm:$0xff]
        %v2344 = vld [vmem:[%s248 + $0x8d] sm:$0xff]
        %v2345 = vld [vmem:[%s248 + $0x95] sm:$0xff]
        %v2346 = vld [vmem:[%s248 + $0x9d] sm:$0xff]
        %v2347 = vld [vmem:[%s248 + $0xa5] sm:$0xff]
        %v2348 = vld [vmem:[%s248 + $0xad] sm:$0xff]
        %v2349 = vld [vmem:[%s248 + $0xb5] sm:$0xff]
        %v2350 = vld [vmem:[%s248 + $0xbd] sm:$0xff]
        %v2351 = vld [vmem:[%s248 + $0xc5] sm:$0xff]
        %v2352 = vld [vmem:[%s248 + $0xcd] sm:$0xff]
        %v2353 = vld [vmem:[%s248 + $0xd5] sm:$0xff]
        %v2354 = vld [vmem:[%s248 + $0xdd] sm:$0xff]
        %v2355 = vld [vmem:[%s248 + $0xe5] sm:$0xff]
        %v2356 = vld [vmem:[%s248 + $0xed] sm:$0xff]
        %v2357 = vld [vmem:[%s248 + $0xf5] sm:$0xff]
        %v2358 = vld [vmem:[%s248 + $0xfd] sm:$0xff]
        %v2359 = vld [vmem:[%s248 + $0x105] sm:$0xff]
        %v2360 = vld [vmem:[%s248 + $0x10d] sm:$0xff]
        %v2361 = vld [vmem:[%s248 + $0x115] sm:$0xff]
        %v2362 = vld [vmem:[%s248 + $0x11d] sm:$0xff]
        %v2363 = vld [vmem:[%s248 + $0x125] sm:$0xff]
        %v2364 = vld [vmem:[%s248 + $0x12d] sm:$0xff]
        %v2365 = vld [vmem:[%s248 + $0x135] sm:$0xff]
        %v2366 = vld [vmem:[%s248 + $0x13d] sm:$0xff]
        %v2368 = vsel %vm339, %v2331, 0
        %v2371 = vsel %vm339, %v2332, 0
        %v2374 = vsel %vm339, %v2333, 0
        %v2377 = vsel %vm339, %v2334, 0
        %v2380 = vsel %vm339, %v2335, 0
        %v2383 = vsel %vm339, %v2336, 0
        %v2386 = vsel %vm339, %v2337, 0
        %v2389 = vsel %vm339, %v2338, 0
        %v2392 = vsel %vm339, %v2339, 0
        %v2395 = vsel %vm339, %v2340, 0
        %v2398 = vsel %vm339, %v2341, 0
        %v2401 = vsel %vm339, %v2342, 0
        %v2404 = vsel %vm339, %v2343, 0
        %v2407 = vsel %vm339, %v2344, 0
        %v2410 = vsel %vm339, %v2345, 0
        %v2413 = vsel %vm339, %v2346, 0
        %v2416 = vsel %vm339, %v2347, 0
        %v2419 = vsel %vm339, %v2348, 0
        %v2422 = vsel %vm339, %v2349, 0
        %v2425 = vsel %vm339, %v2350, 0
        %v2428 = vsel %vm339, %v2351, 0
        %v2431 = vsel %vm339, %v2352, 0
        %v2434 = vsel %vm339, %v2353, 0
        %v2437 = vsel %vm339, %v2354, 0
        %v2440 = vsel %vm339, %v2355, 0
        %v2443 = vsel %vm339, %v2356, 0
        %v2446 = vsel %vm339, %v2357, 0
        %v2449 = vsel %vm339, %v2358, 0
        %v2452 = vsel %vm339, %v2359, 0
        %v2455 = vsel %vm339, %v2360, 0
        %v2458 = vsel %vm339, %v2361, 0
        %v2461 = vsel %vm339, %v2362, 0
        %v2464 = vsel %vm339, %v2363, 0
        %v2467 = vsel %vm339, %v2364, 0
        %v2470 = vsel %vm339, %v2365, 0
        %v2473 = vsel %vm339, %v2366, 0
        %2475 = vmatpush.msra.mxu0 0.0
        %2476 = vmatpush.msra.mxu0 0.0
        %2477 = vmatpush.msra.mxu0 0.0
        %2478 = vmatpush.msra.mxu0 0.0
        %2479 = vmatpush.msra.mxu0 0.0
        %2480 = vmatpush.msra.mxu0 0.0
        %2481 = vmatpush.msra.mxu0 0.0
        %2482 = vmatpush.msra.mxu0 0.0
        %2483 = vmatpush.msra.mxu0 0.0
        %2484 = vmatpush.msra.mxu0 0.0
        %2485 = vmatpush.msra.mxu0 0.0
        %2486 = vmatpush.msra.mxu0 0.0
        %2487 = vmatpush.msra.mxu0 0.0
        %2488 = vmatpush.msra.mxu0 0.0
        %2489 = vmatpush.msra.mxu0 0.0
        %2490 = vmatpush.msra.mxu0 %v264
        %2491 = vmatmul.f32.gmra.mxu0 %v2368
        %v2492 = vpop.f32.mrf.mxu0
        %v2493 = vadd.f32 0.0, %v2492
        %2494 = vmatmul.f32.gmra.mxu0 %v2371
        %v2495 = vpop.f32.mrf.mxu0
        %v2496 = vadd.f32 0.0, %v2495
        %2497 = vmatmul.f32.gmra.mxu0 %v2374
        %v2498 = vpop.f32.mrf.mxu0
        %v2499 = vadd.f32 0.0, %v2498
        %2500 = vmatmul.f32.gmra.mxu0 %v2377
        %v2501 = vpop.f32.mrf.mxu0
        %v2502 = vadd.f32 0.0, %v2501
        %2503 = vmatmul.f32.gmra.mxu0 %v2380
        %v2504 = vpop.f32.mrf.mxu0
        %v2505 = vadd.f32 0.0, %v2504
        %2506 = vmatmul.f32.gmra.mxu0 %v2383
        %v2507 = vpop.f32.mrf.mxu0
        %v2508 = vadd.f32 0.0, %v2507
        %2509 = vmatmul.f32.gmra.mxu0 %v2386
        %v2510 = vpop.f32.mrf.mxu0
        %v2511 = vadd.f32 0.0, %v2510
        %2512 = vmatmul.f32.gmra.mxu0 %v2389
        %v2513 = vpop.f32.mrf.mxu0
        %v2514 = vadd.f32 0.0, %v2513
        %2515 = vmatmul.f32.gmra.mxu0 %v2392
        %v2516 = vpop.f32.mrf.mxu0
        %v2517 = vadd.f32 0.0, %v2516
        %2518 = vmatmul.f32.gmra.mxu0 %v2395
        %v2519 = vpop.f32.mrf.mxu0
        %v2520 = vadd.f32 0.0, %v2519
        %2521 = vmatmul.f32.gmra.mxu0 %v2398
        %v2522 = vpop.f32.mrf.mxu0
        %v2523 = vadd.f32 0.0, %v2522
        %2524 = vmatmul.f32.gmra.mxu0 %v2401
        %v2525 = vpop.f32.mrf.mxu0
        %v2526 = vadd.f32 0.0, %v2525
        %2527 = vmatmul.f32.gmra.mxu0 %v2404
        %v2528 = vpop.f32.mrf.mxu0
        %v2529 = vadd.f32 0.0, %v2528
        %2530 = vmatmul.f32.gmra.mxu0 %v2407
        %v2531 = vpop.f32.mrf.mxu0
        %v2532 = vadd.f32 0.0, %v2531
        %2533 = vmatmul.f32.gmra.mxu0 %v2410
        %v2534 = vpop.f32.mrf.mxu0
        %v2535 = vadd.f32 0.0, %v2534
        %2536 = vmatmul.f32.gmra.mxu0 %v2413
        %v2537 = vpop.f32.mrf.mxu0
        %v2538 = vadd.f32 0.0, %v2537
        %2539 = vmatmul.f32.gmra.mxu0 %v2416
        %v2540 = vpop.f32.mrf.mxu0
        %v2541 = vadd.f32 0.0, %v2540
        %2542 = vmatmul.f32.gmra.mxu0 %v2419
        %v2543 = vpop.f32.mrf.mxu0
        %v2544 = vadd.f32 0.0, %v2543
        %2545 = vmatmul.f32.gmra.mxu0 %v2422
        %v2546 = vpop.f32.mrf.mxu0
        %v2547 = vadd.f32 0.0, %v2546
        %2548 = vmatmul.f32.gmra.mxu0 %v2425
        %v2549 = vpop.f32.mrf.mxu0
        %v2550 = vadd.f32 0.0, %v2549
        %2551 = vmatmul.f32.gmra.mxu0 %v2428
        %v2552 = vpop.f32.mrf.mxu0
        %v2553 = vadd.f32 0.0, %v2552
        %2554 = vmatmul.f32.gmra.mxu0 %v2431
        %v2555 = vpop.f32.mrf.mxu0
        %v2556 = vadd.f32 0.0, %v2555
        %2557 = vmatmul.f32.gmra.mxu0 %v2434
        %v2558 = vpop.f32.mrf.mxu0
        %v2559 = vadd.f32 0.0, %v2558
        %2560 = vmatmul.f32.gmra.mxu0 %v2437
        %v2561 = vpop.f32.mrf.mxu0
        %v2562 = vadd.f32 0.0, %v2561
        %2563 = vmatmul.f32.gmra.mxu0 %v2440
        %v2564 = vpop.f32.mrf.mxu0
        %v2565 = vadd.f32 0.0, %v2564
        %2566 = vmatmul.f32.gmra.mxu0 %v2443
        %v2567 = vpop.f32.mrf.mxu0
        %v2568 = vadd.f32 0.0, %v2567
        %2569 = vmatmul.f32.gmra.mxu0 %v2446
        %v2570 = vpop.f32.mrf.mxu0
        %v2571 = vadd.f32 0.0, %v2570
        %2572 = vmatmul.f32.gmra.mxu0 %v2449
        %v2573 = vpop.f32.mrf.mxu0
        %v2574 = vadd.f32 0.0, %v2573
        %2575 = vmatmul.f32.gmra.mxu0 %v2452
        %v2576 = vpop.f32.mrf.mxu0
        %v2577 = vadd.f32 0.0, %v2576
        %2578 = vmatmul.f32.gmra.mxu0 %v2455
        %v2579 = vpop.f32.mrf.mxu0
        %v2580 = vadd.f32 0.0, %v2579
        %2581 = vmatmul.f32.gmra.mxu0 %v2458
        %v2582 = vpop.f32.mrf.mxu0
        %v2583 = vadd.f32 0.0, %v2582
        %2584 = vmatmul.f32.gmra.mxu0 %v2461
        %v2585 = vpop.f32.mrf.mxu0
        %v2586 = vadd.f32 0.0, %v2585
        %2587 = vmatmul.f32.gmra.mxu0 %v2464
        %v2588 = vpop.f32.mrf.mxu0
        %v2589 = vadd.f32 0.0, %v2588
        %2590 = vmatmul.f32.gmra.mxu0 %v2467
        %v2591 = vpop.f32.mrf.mxu0
        %v2592 = vadd.f32 0.0, %v2591
        %2593 = vmatmul.f32.gmra.mxu0 %v2470
        %v2594 = vpop.f32.mrf.mxu0
        %v2595 = vadd.f32 0.0, %v2594
        %2596 = vmatmul.f32.gmra.mxu0 %v2473
        %v2597 = vpop.f32.mrf.mxu0
        %v2598 = vadd.f32 0.0, %v2597
        %2599 = vdwg.mxu0
        %v2600 = vadd.f32 %v2295, %v2493
        %v2601 = vadd.f32 %v2296, %v2496
        %v2602 = vadd.f32 %v2297, %v2499
        %v2603 = vadd.f32 %v2298, %v2502
        %v2604 = vadd.f32 %v2299, %v2505
        %v2605 = vadd.f32 %v2300, %v2508
        %v2606 = vadd.f32 %v2301, %v2511
        %v2607 = vadd.f32 %v2302, %v2514
        %v2608 = vadd.f32 %v2303, %v2517
        %v2609 = vadd.f32 %v2304, %v2520
        %v2610 = vadd.f32 %v2305, %v2523
        %v2611 = vadd.f32 %v2306, %v2526
        %v2612 = vadd.f32 %v2307, %v2529
        %v2613 = vadd.f32 %v2308, %v2532
        %v2614 = vadd.f32 %v2309, %v2535
        %v2615 = vadd.f32 %v2310, %v2538
        %v2616 = vadd.f32 %v2311, %v2541
        %v2617 = vadd.f32 %v2312, %v2544
        %v2618 = vadd.f32 %v2313, %v2547
        %v2619 = vadd.f32 %v2314, %v2550
        %v2620 = vadd.f32 %v2315, %v2553
        %v2621 = vadd.f32 %v2316, %v2556
        %v2622 = vadd.f32 %v2317, %v2559
        %v2623 = vadd.f32 %v2318, %v2562
        %v2624 = vadd.f32 %v2319, %v2565
        %v2625 = vadd.f32 %v2320, %v2568
        %v2626 = vadd.f32 %v2321, %v2571
        %v2627 = vadd.f32 %v2322, %v2574
        %v2628 = vadd.f32 %v2323, %v2577
        %v2629 = vadd.f32 %v2324, %v2580
        %v2630 = vadd.f32 %v2325, %v2583
        %v2631 = vadd.f32 %v2326, %v2586
        %v2632 = vadd.f32 %v2327, %v2589
        %v2633 = vadd.f32 %v2328, %v2592
        %v2634 = vadd.f32 %v2329, %v2595
        %v2635 = vadd.f32 %v2330, %v2598
        %v2636 = vld [vmem:[%s248 + $0x26] sm:$0xff]
        %v2637 = vld [vmem:[%s248 + $0x2e] sm:$0xff]
        %v2638 = vld [vmem:[%s248 + $0x36] sm:$0xff]
        %v2639 = vld [vmem:[%s248 + $0x3e] sm:$0xff]
        %v2640 = vld [vmem:[%s248 + $0x46] sm:$0xff]
        %v2641 = vld [vmem:[%s248 + $0x4e] sm:$0xff]
        %v2642 = vld [vmem:[%s248 + $0x56] sm:$0xff]
        %v2643 = vld [vmem:[%s248 + $0x5e] sm:$0xff]
        %v2644 = vld [vmem:[%s248 + $0x66] sm:$0xff]
        %v2645 = vld [vmem:[%s248 + $0x6e] sm:$0xff]
        %v2646 = vld [vmem:[%s248 + $0x76] sm:$0xff]
        %v2647 = vld [vmem:[%s248 + $0x7e] sm:$0xff]
        %v2648 = vld [vmem:[%s248 + $0x86] sm:$0xff]
        %v2649 = vld [vmem:[%s248 + $0x8e] sm:$0xff]
        %v2650 = vld [vmem:[%s248 + $0x96] sm:$0xff]
        %v2651 = vld [vmem:[%s248 + $0x9e] sm:$0xff]
        %v2652 = vld [vmem:[%s248 + $0xa6] sm:$0xff]
        %v2653 = vld [vmem:[%s248 + $0xae] sm:$0xff]
        %v2654 = vld [vmem:[%s248 + $0xb6] sm:$0xff]
        %v2655 = vld [vmem:[%s248 + $0xbe] sm:$0xff]
        %v2656 = vld [vmem:[%s248 + $0xc6] sm:$0xff]
        %v2657 = vld [vmem:[%s248 + $0xce] sm:$0xff]
        %v2658 = vld [vmem:[%s248 + $0xd6] sm:$0xff]
        %v2659 = vld [vmem:[%s248 + $0xde] sm:$0xff]
        %v2660 = vld [vmem:[%s248 + $0xe6] sm:$0xff]
        %v2661 = vld [vmem:[%s248 + $0xee] sm:$0xff]
        %v2662 = vld [vmem:[%s248 + $0xf6] sm:$0xff]
        %v2663 = vld [vmem:[%s248 + $0xfe] sm:$0xff]
        %v2664 = vld [vmem:[%s248 + $0x106] sm:$0xff]
        %v2665 = vld [vmem:[%s248 + $0x10e] sm:$0xff]
        %v2666 = vld [vmem:[%s248 + $0x116] sm:$0xff]
        %v2667 = vld [vmem:[%s248 + $0x11e] sm:$0xff]
        %v2668 = vld [vmem:[%s248 + $0x126] sm:$0xff]
        %v2669 = vld [vmem:[%s248 + $0x12e] sm:$0xff]
        %v2670 = vld [vmem:[%s248 + $0x136] sm:$0xff]
        %v2671 = vld [vmem:[%s248 + $0x13e] sm:$0xff]
        %v2673 = vsel %vm339, %v2636, 0
        %v2676 = vsel %vm339, %v2637, 0
        %v2679 = vsel %vm339, %v2638, 0
        %v2682 = vsel %vm339, %v2639, 0
        %v2685 = vsel %vm339, %v2640, 0
        %v2688 = vsel %vm339, %v2641, 0
        %v2691 = vsel %vm339, %v2642, 0
        %v2694 = vsel %vm339, %v2643, 0
        %v2697 = vsel %vm339, %v2644, 0
        %v2700 = vsel %vm339, %v2645, 0
        %v2703 = vsel %vm339, %v2646, 0
        %v2706 = vsel %vm339, %v2647, 0
        %v2709 = vsel %vm339, %v2648, 0
        %v2712 = vsel %vm339, %v2649, 0
        %v2715 = vsel %vm339, %v2650, 0
        %v2718 = vsel %vm339, %v2651, 0
        %v2721 = vsel %vm339, %v2652, 0
        %v2724 = vsel %vm339, %v2653, 0
        %v2727 = vsel %vm339, %v2654, 0
        %v2730 = vsel %vm339, %v2655, 0
        %v2733 = vsel %vm339, %v2656, 0
        %v2736 = vsel %vm339, %v2657, 0
        %v2739 = vsel %vm339, %v2658, 0
        %v2742 = vsel %vm339, %v2659, 0
        %v2745 = vsel %vm339, %v2660, 0
        %v2748 = vsel %vm339, %v2661, 0
        %v2751 = vsel %vm339, %v2662, 0
        %v2754 = vsel %vm339, %v2663, 0
        %v2757 = vsel %vm339, %v2664, 0
        %v2760 = vsel %vm339, %v2665, 0
        %v2763 = vsel %vm339, %v2666, 0
        %v2766 = vsel %vm339, %v2667, 0
        %v2769 = vsel %vm339, %v2668, 0
        %v2772 = vsel %vm339, %v2669, 0
        %v2775 = vsel %vm339, %v2670, 0
        %v2778 = vsel %vm339, %v2671, 0
        %2780 = vmatpush.msra.mxu0 0.0
        %2781 = vmatpush.msra.mxu0 0.0
        %2782 = vmatpush.msra.mxu0 0.0
        %2783 = vmatpush.msra.mxu0 0.0
        %2784 = vmatpush.msra.mxu0 0.0
        %2785 = vmatpush.msra.mxu0 0.0
        %2786 = vmatpush.msra.mxu0 0.0
        %2787 = vmatpush.msra.mxu0 0.0
        %2788 = vmatpush.msra.mxu0 0.0
        %2789 = vmatpush.msra.mxu0 0.0
        %2790 = vmatpush.msra.mxu0 0.0
        %2791 = vmatpush.msra.mxu0 0.0
        %2792 = vmatpush.msra.mxu0 0.0
        %2793 = vmatpush.msra.mxu0 0.0
        %2794 = vmatpush.msra.mxu0 0.0
        %2795 = vmatpush.msra.mxu0 %v266
        %2796 = vmatmul.f32.gmra.mxu0 %v2673
        %v2797 = vpop.f32.mrf.mxu0
        %v2798 = vadd.f32 0.0, %v2797
        %2799 = vmatmul.f32.gmra.mxu0 %v2676
        %v2800 = vpop.f32.mrf.mxu0
        %v2801 = vadd.f32 0.0, %v2800
        %2802 = vmatmul.f32.gmra.mxu0 %v2679
        %v2803 = vpop.f32.mrf.mxu0
        %v2804 = vadd.f32 0.0, %v2803
        %2805 = vmatmul.f32.gmra.mxu0 %v2682
        %v2806 = vpop.f32.mrf.mxu0
        %v2807 = vadd.f32 0.0, %v2806
        %2808 = vmatmul.f32.gmra.mxu0 %v2685
        %v2809 = vpop.f32.mrf.mxu0
        %v2810 = vadd.f32 0.0, %v2809
        %2811 = vmatmul.f32.gmra.mxu0 %v2688
        %v2812 = vpop.f32.mrf.mxu0
        %v2813 = vadd.f32 0.0, %v2812
        %2814 = vmatmul.f32.gmra.mxu0 %v2691
        %v2815 = vpop.f32.mrf.mxu0
        %v2816 = vadd.f32 0.0, %v2815
        %2817 = vmatmul.f32.gmra.mxu0 %v2694
        %v2818 = vpop.f32.mrf.mxu0
        %v2819 = vadd.f32 0.0, %v2818
        %2820 = vmatmul.f32.gmra.mxu0 %v2697
        %v2821 = vpop.f32.mrf.mxu0
        %v2822 = vadd.f32 0.0, %v2821
        %2823 = vmatmul.f32.gmra.mxu0 %v2700
        %v2824 = vpop.f32.mrf.mxu0
        %v2825 = vadd.f32 0.0, %v2824
        %2826 = vmatmul.f32.gmra.mxu0 %v2703
        %v2827 = vpop.f32.mrf.mxu0
        %v2828 = vadd.f32 0.0, %v2827
        %2829 = vmatmul.f32.gmra.mxu0 %v2706
        %v2830 = vpop.f32.mrf.mxu0
        %v2831 = vadd.f32 0.0, %v2830
        %2832 = vmatmul.f32.gmra.mxu0 %v2709
        %v2833 = vpop.f32.mrf.mxu0
        %v2834 = vadd.f32 0.0, %v2833
        %2835 = vmatmul.f32.gmra.mxu0 %v2712
        %v2836 = vpop.f32.mrf.mxu0
        %v2837 = vadd.f32 0.0, %v2836
        %2838 = vmatmul.f32.gmra.mxu0 %v2715
        %v2839 = vpop.f32.mrf.mxu0
        %v2840 = vadd.f32 0.0, %v2839
        %2841 = vmatmul.f32.gmra.mxu0 %v2718
        %v2842 = vpop.f32.mrf.mxu0
        %v2843 = vadd.f32 0.0, %v2842
        %2844 = vmatmul.f32.gmra.mxu0 %v2721
        %v2845 = vpop.f32.mrf.mxu0
        %v2846 = vadd.f32 0.0, %v2845
        %2847 = vmatmul.f32.gmra.mxu0 %v2724
        %v2848 = vpop.f32.mrf.mxu0
        %v2849 = vadd.f32 0.0, %v2848
        %2850 = vmatmul.f32.gmra.mxu0 %v2727
        %v2851 = vpop.f32.mrf.mxu0
        %v2852 = vadd.f32 0.0, %v2851
        %2853 = vmatmul.f32.gmra.mxu0 %v2730
        %v2854 = vpop.f32.mrf.mxu0
        %v2855 = vadd.f32 0.0, %v2854
        %2856 = vmatmul.f32.gmra.mxu0 %v2733
        %v2857 = vpop.f32.mrf.mxu0
        %v2858 = vadd.f32 0.0, %v2857
        %2859 = vmatmul.f32.gmra.mxu0 %v2736
        %v2860 = vpop.f32.mrf.mxu0
        %v2861 = vadd.f32 0.0, %v2860
        %2862 = vmatmul.f32.gmra.mxu0 %v2739
        %v2863 = vpop.f32.mrf.mxu0
        %v2864 = vadd.f32 0.0, %v2863
        %2865 = vmatmul.f32.gmra.mxu0 %v2742
        %v2866 = vpop.f32.mrf.mxu0
        %v2867 = vadd.f32 0.0, %v2866
        %2868 = vmatmul.f32.gmra.mxu0 %v2745
        %v2869 = vpop.f32.mrf.mxu0
        %v2870 = vadd.f32 0.0, %v2869
        %2871 = vmatmul.f32.gmra.mxu0 %v2748
        %v2872 = vpop.f32.mrf.mxu0
        %v2873 = vadd.f32 0.0, %v2872
        %2874 = vmatmul.f32.gmra.mxu0 %v2751
        %v2875 = vpop.f32.mrf.mxu0
        %v2876 = vadd.f32 0.0, %v2875
        %2877 = vmatmul.f32.gmra.mxu0 %v2754
        %v2878 = vpop.f32.mrf.mxu0
        %v2879 = vadd.f32 0.0, %v2878
        %2880 = vmatmul.f32.gmra.mxu0 %v2757
        %v2881 = vpop.f32.mrf.mxu0
        %v2882 = vadd.f32 0.0, %v2881
        %2883 = vmatmul.f32.gmra.mxu0 %v2760
        %v2884 = vpop.f32.mrf.mxu0
        %v2885 = vadd.f32 0.0, %v2884
        %2886 = vmatmul.f32.gmra.mxu0 %v2763
        %v2887 = vpop.f32.mrf.mxu0
        %v2888 = vadd.f32 0.0, %v2887
        %2889 = vmatmul.f32.gmra.mxu0 %v2766
        %v2890 = vpop.f32.mrf.mxu0
        %v2891 = vadd.f32 0.0, %v2890
        %2892 = vmatmul.f32.gmra.mxu0 %v2769
        %v2893 = vpop.f32.mrf.mxu0
        %v2894 = vadd.f32 0.0, %v2893
        %2895 = vmatmul.f32.gmra.mxu0 %v2772
        %v2896 = vpop.f32.mrf.mxu0
        %v2897 = vadd.f32 0.0, %v2896
        %2898 = vmatmul.f32.gmra.mxu0 %v2775
        %v2899 = vpop.f32.mrf.mxu0
        %v2900 = vadd.f32 0.0, %v2899
        %2901 = vmatmul.f32.gmra.mxu0 %v2778
        %v2902 = vpop.f32.mrf.mxu0
        %v2903 = vadd.f32 0.0, %v2902
        %2904 = vdwg.mxu0
        %v2905 = vadd.f32 %v2600, %v2798
        %v2906 = vadd.f32 %v2601, %v2801
        %v2907 = vadd.f32 %v2602, %v2804
        %v2908 = vadd.f32 %v2603, %v2807
        %v2909 = vadd.f32 %v2604, %v2810
        %v2910 = vadd.f32 %v2605, %v2813
        %v2911 = vadd.f32 %v2606, %v2816
        %v2912 = vadd.f32 %v2607, %v2819
        %v2913 = vadd.f32 %v2608, %v2822
        %v2914 = vadd.f32 %v2609, %v2825
        %v2915 = vadd.f32 %v2610, %v2828
        %v2916 = vadd.f32 %v2611, %v2831
        %v2917 = vadd.f32 %v2612, %v2834
        %v2918 = vadd.f32 %v2613, %v2837
        %v2919 = vadd.f32 %v2614, %v2840
        %v2920 = vadd.f32 %v2615, %v2843
        %v2921 = vadd.f32 %v2616, %v2846
        %v2922 = vadd.f32 %v2617, %v2849
        %v2923 = vadd.f32 %v2618, %v2852
        %v2924 = vadd.f32 %v2619, %v2855
        %v2925 = vadd.f32 %v2620, %v2858
        %v2926 = vadd.f32 %v2621, %v2861
        %v2927 = vadd.f32 %v2622, %v2864
        %v2928 = vadd.f32 %v2623, %v2867
        %v2929 = vadd.f32 %v2624, %v2870
        %v2930 = vadd.f32 %v2625, %v2873
        %v2931 = vadd.f32 %v2626, %v2876
        %v2932 = vadd.f32 %v2627, %v2879
        %v2933 = vadd.f32 %v2628, %v2882
        %v2934 = vadd.f32 %v2629, %v2885
        %v2935 = vadd.f32 %v2630, %v2888
        %v2936 = vadd.f32 %v2631, %v2891
        %v2937 = vadd.f32 %v2632, %v2894
        %v2938 = vadd.f32 %v2633, %v2897
        %v2939 = vadd.f32 %v2634, %v2900
        %v2940 = vadd.f32 %v2635, %v2903
        %v2942 = vperm.slane %v249, 0
        %v2944 = vadd.f32 %v2905, %v2942
        %v2945 = vadd.f32 %v2906, %v2942
        %v2946 = vadd.f32 %v2907, %v2942
        %v2947 = vadd.f32 %v2908, %v2942
        %v2948 = vadd.f32 %v2909, %v2942
        %v2949 = vadd.f32 %v2910, %v2942
        %v2950 = vadd.f32 %v2911, %v2942
        %v2951 = vadd.f32 %v2912, %v2942
        %v2952 = vadd.f32 %v2913, %v2942
        %v2953 = vadd.f32 %v2914, %v2942
        %v2954 = vadd.f32 %v2915, %v2942
        %v2955 = vadd.f32 %v2916, %v2942
        %v2956 = vadd.f32 %v2917, %v2942
        %v2957 = vadd.f32 %v2918, %v2942
        %v2958 = vadd.f32 %v2919, %v2942
        %v2959 = vadd.f32 %v2920, %v2942
        %v2960 = vadd.f32 %v2921, %v2942
        %v2961 = vadd.f32 %v2922, %v2942
        %v2962 = vadd.f32 %v2923, %v2942
        %v2963 = vadd.f32 %v2924, %v2942
        %v2964 = vadd.f32 %v2925, %v2942
        %v2965 = vadd.f32 %v2926, %v2942
        %v2966 = vadd.f32 %v2927, %v2942
        %v2967 = vadd.f32 %v2928, %v2942
        %v2968 = vadd.f32 %v2929, %v2942
        %v2969 = vadd.f32 %v2930, %v2942
        %v2970 = vadd.f32 %v2931, %v2942
        %v2971 = vadd.f32 %v2932, %v2942
        %v2972 = vadd.f32 %v2933, %v2942
        %v2973 = vadd.f32 %v2934, %v2942
        %v2974 = vadd.f32 %v2935, %v2942
        %v2975 = vadd.f32 %v2936, %v2942
        %v2976 = vadd.f32 %v2937, %v2942
        %v2977 = vadd.f32 %v2938, %v2942
        %v2978 = vadd.f32 %v2939, %v2942
        %v2979 = vadd.f32 %v2940, %v2942
        %v2980 = vmax.f32 %v2944, 0.0
        %v2981 = vmax.f32 %v2945, 0.0
        %v2982 = vmax.f32 %v2946, 0.0
        %v2983 = vmax.f32 %v2947, 0.0
        %v2984 = vmax.f32 %v2948, 0.0
        %v2985 = vmax.f32 %v2949, 0.0
        %v2986 = vmax.f32 %v2950, 0.0
        %v2987 = vmax.f32 %v2951, 0.0
        %v2988 = vmax.f32 %v2952, 0.0
        %v2989 = vmax.f32 %v2953, 0.0
        %v2990 = vmax.f32 %v2954, 0.0
        %v2991 = vmax.f32 %v2955, 0.0
        %v2992 = vmax.f32 %v2956, 0.0
        %v2993 = vmax.f32 %v2957, 0.0
        %v2994 = vmax.f32 %v2958, 0.0
        %v2995 = vmax.f32 %v2959, 0.0
        %v2996 = vmax.f32 %v2960, 0.0
        %v2997 = vmax.f32 %v2961, 0.0
        %v2998 = vmax.f32 %v2962, 0.0
        %v2999 = vmax.f32 %v2963, 0.0
        %v3000 = vmax.f32 %v2964, 0.0
        %v3001 = vmax.f32 %v2965, 0.0
        %v3002 = vmax.f32 %v2966, 0.0
        %v3003 = vmax.f32 %v2967, 0.0
        %v3004 = vmax.f32 %v2968, 0.0
        %v3005 = vmax.f32 %v2969, 0.0
        %v3006 = vmax.f32 %v2970, 0.0
        %v3007 = vmax.f32 %v2971, 0.0
        %v3008 = vmax.f32 %v2972, 0.0
        %v3009 = vmax.f32 %v2973, 0.0
        %v3010 = vmax.f32 %v2974, 0.0
        %v3011 = vmax.f32 %v2975, 0.0
        %v3012 = vmax.f32 %v2976, 0.0
        %v3013 = vmax.f32 %v2977, 0.0
        %v3014 = vmax.f32 %v2978, 0.0
        %v3015 = vmax.f32 %v2979, 0.0
        %v3016 = vld [vmem:[%s1] sm:$0xff]
        %v3017 = vld [vmem:[%s1 + $0x8] sm:$0xff]
        %v3018 = vld [vmem:[%s1 + $0x10] sm:$0xff]
        %v3019 = vld [vmem:[%s1 + $0x18] sm:$0xff]
        %v3020 = vld [vmem:[%s1 + $0x20] sm:$0xff]
        %v3021 = vld [vmem:[%s1 + $0x28] sm:$0xff]
        %v3022 = vld [vmem:[%s1 + $0x30] sm:$0xff]
        %v3023 = vld [vmem:[%s1 + $0x38] sm:$0xff]
        %v3024 = vld [vmem:[%s1 + $0x40] sm:$0xff]
        %v3025 = vld [vmem:[%s1 + $0x48] sm:$0xff]
        %v3026 = vld [vmem:[%s1 + $0x50] sm:$0xff]
        %v3027 = vld [vmem:[%s1 + $0x58] sm:$0xff]
        %v3028 = vld [vmem:[%s1 + $0x60] sm:$0xff]
        %v3029 = vld [vmem:[%s1 + $0x68] sm:$0xff]
        %v3030 = vld [vmem:[%s1 + $0x70] sm:$0xff]
        %v3031 = vld [vmem:[%s1 + $0x78] sm:$0xff]
        %v3032 = vld [vmem:[%s1 + $0x80] sm:$0xff]
        %v3033 = vld [vmem:[%s1 + $0x88] sm:$0xff]
        %v3034 = vld [vmem:[%s1 + $0x90] sm:$0xff]
        %v3035 = vld [vmem:[%s1 + $0x98] sm:$0xff]
        %v3036 = vld [vmem:[%s1 + $0xa0] sm:$0xff]
        %v3037 = vld [vmem:[%s1 + $0xa8] sm:$0xff]
        %v3038 = vld [vmem:[%s1 + $0xb0] sm:$0xff]
        %v3039 = vld [vmem:[%s1 + $0xb8] sm:$0xff]
        %v3040 = vld [vmem:[%s1 + $0xc0] sm:$0xff]
        %v3041 = vld [vmem:[%s1 + $0xc8] sm:$0xff]
        %v3042 = vld [vmem:[%s1 + $0xd0] sm:$0xff]
        %v3043 = vld [vmem:[%s1 + $0xd8] sm:$0xff]
        %v3044 = vld [vmem:[%s1 + $0xe0] sm:$0xff]
        %v3045 = vld [vmem:[%s1 + $0xe8] sm:$0xff]
        %v3046 = vld [vmem:[%s1 + $0xf0] sm:$0xff]
        %v3047 = vld [vmem:[%s1 + $0xf8] sm:$0xff]
        %v3048 = vld [vmem:[%s1 + $0x100] sm:$0xff]
        %v3049 = vld [vmem:[%s1 + $0x108] sm:$0xff]
        %v3050 = vld [vmem:[%s1 + $0x110] sm:$0xff]
        %v3051 = vld [vmem:[%s1 + $0x118] sm:$0xff]
        %3053 = vset.pattern.permute.xlu0 0
        %3054 = vperm.xlu0 %3053, %v3016
        %v3055 = vpop.permute.xlu0 %3054
        %3058 = vset.pattern.permute.xlu0 0
        %3059 = vperm.xlu0 %3058, %v3017
        %v3060 = vpop.permute.xlu0 %3059
        %3063 = vset.pattern.permute.xlu0 0
        %3064 = vperm.xlu0 %3063, %v3018
        %v3065 = vpop.permute.xlu0 %3064
        %3068 = vset.pattern.permute.xlu0 0
        %3069 = vperm.xlu0 %3068, %v3019
        %v3070 = vpop.permute.xlu0 %3069
        %3073 = vset.pattern.permute.xlu0 0
        %3074 = vperm.xlu0 %3073, %v3020
        %v3075 = vpop.permute.xlu0 %3074
        %3078 = vset.pattern.permute.xlu0 0
        %3079 = vperm.xlu0 %3078, %v3021
        %v3080 = vpop.permute.xlu0 %3079
        %3083 = vset.pattern.permute.xlu0 0
        %3084 = vperm.xlu0 %3083, %v3022
        %v3085 = vpop.permute.xlu0 %3084
        %3088 = vset.pattern.permute.xlu0 0
        %3089 = vperm.xlu0 %3088, %v3023
        %v3090 = vpop.permute.xlu0 %3089
        %3093 = vset.pattern.permute.xlu0 0
        %3094 = vperm.xlu0 %3093, %v3024
        %v3095 = vpop.permute.xlu0 %3094
        %3098 = vset.pattern.permute.xlu0 0
        %3099 = vperm.xlu0 %3098, %v3025
        %v3100 = vpop.permute.xlu0 %3099
        %3103 = vset.pattern.permute.xlu0 0
        %3104 = vperm.xlu0 %3103, %v3026
        %v3105 = vpop.permute.xlu0 %3104
        %3108 = vset.pattern.permute.xlu0 0
        %3109 = vperm.xlu0 %3108, %v3027
        %v3110 = vpop.permute.xlu0 %3109
        %3113 = vset.pattern.permute.xlu0 0
        %3114 = vperm.xlu0 %3113, %v3028
        %v3115 = vpop.permute.xlu0 %3114
        %3118 = vset.pattern.permute.xlu0 0
        %3119 = vperm.xlu0 %3118, %v3029
        %v3120 = vpop.permute.xlu0 %3119
        %3123 = vset.pattern.permute.xlu0 0
        %3124 = vperm.xlu0 %3123, %v3030
        %v3125 = vpop.permute.xlu0 %3124
        %3128 = vset.pattern.permute.xlu0 0
        %3129 = vperm.xlu0 %3128, %v3031
        %v3130 = vpop.permute.xlu0 %3129
        %3133 = vset.pattern.permute.xlu0 0
        %3134 = vperm.xlu0 %3133, %v3032
        %v3135 = vpop.permute.xlu0 %3134
        %3138 = vset.pattern.permute.xlu0 0
        %3139 = vperm.xlu0 %3138, %v3033
        %v3140 = vpop.permute.xlu0 %3139
        %3143 = vset.pattern.permute.xlu0 0
        %3144 = vperm.xlu0 %3143, %v3034
        %v3145 = vpop.permute.xlu0 %3144
        %3148 = vset.pattern.permute.xlu0 0
        %3149 = vperm.xlu0 %3148, %v3035
        %v3150 = vpop.permute.xlu0 %3149
        %3153 = vset.pattern.permute.xlu0 0
        %3154 = vperm.xlu0 %3153, %v3036
        %v3155 = vpop.permute.xlu0 %3154
        %3158 = vset.pattern.permute.xlu0 0
        %3159 = vperm.xlu0 %3158, %v3037
        %v3160 = vpop.permute.xlu0 %3159
        %3163 = vset.pattern.permute.xlu0 0
        %3164 = vperm.xlu0 %3163, %v3038
        %v3165 = vpop.permute.xlu0 %3164
        %3168 = vset.pattern.permute.xlu0 0
        %3169 = vperm.xlu0 %3168, %v3039
        %v3170 = vpop.permute.xlu0 %3169
        %3173 = vset.pattern.permute.xlu0 0
        %3174 = vperm.xlu0 %3173, %v3040
        %v3175 = vpop.permute.xlu0 %3174
        %3178 = vset.pattern.permute.xlu0 0
        %3179 = vperm.xlu0 %3178, %v3041
        %v3180 = vpop.permute.xlu0 %3179
        %3183 = vset.pattern.permute.xlu0 0
        %3184 = vperm.xlu0 %3183, %v3042
        %v3185 = vpop.permute.xlu0 %3184
        %3188 = vset.pattern.permute.xlu0 0
        %3189 = vperm.xlu0 %3188, %v3043
        %v3190 = vpop.permute.xlu0 %3189
        %3193 = vset.pattern.permute.xlu0 0
        %3194 = vperm.xlu0 %3193, %v3044
        %v3195 = vpop.permute.xlu0 %3194
        %3198 = vset.pattern.permute.xlu0 0
        %3199 = vperm.xlu0 %3198, %v3045
        %v3200 = vpop.permute.xlu0 %3199
        %3203 = vset.pattern.permute.xlu0 0
        %3204 = vperm.xlu0 %3203, %v3046
        %v3205 = vpop.permute.xlu0 %3204
        %3208 = vset.pattern.permute.xlu0 0
        %3209 = vperm.xlu0 %3208, %v3047
        %v3210 = vpop.permute.xlu0 %3209
        %3213 = vset.pattern.permute.xlu0 0
        %3214 = vperm.xlu0 %3213, %v3048
        %v3215 = vpop.permute.xlu0 %3214
        %3218 = vset.pattern.permute.xlu0 0
        %3219 = vperm.xlu0 %3218, %v3049
        %v3220 = vpop.permute.xlu0 %3219
        %3223 = vset.pattern.permute.xlu0 0
        %3224 = vperm.xlu0 %3223, %v3050
        %v3225 = vpop.permute.xlu0 %3224
        %3228 = vset.pattern.permute.xlu0 0
        %3229 = vperm.xlu0 %3228, %v3051
        %v3230 = vpop.permute.xlu0 %3229
        %v3232 = vmul.f32 %v2980, %v3055
        %v3233 = vmul.f32 %v2981, %v3060
        %v3234 = vmul.f32 %v2982, %v3065
        %v3235 = vmul.f32 %v2983, %v3070
        %v3236 = vmul.f32 %v2984, %v3075
        %v3237 = vmul.f32 %v2985, %v3080
        %v3238 = vmul.f32 %v2986, %v3085
        %v3239 = vmul.f32 %v2987, %v3090
        %v3240 = vmul.f32 %v2988, %v3095
        %v3241 = vmul.f32 %v2989, %v3100
        %v3242 = vmul.f32 %v2990, %v3105
        %v3243 = vmul.f32 %v2991, %v3110
        %v3244 = vmul.f32 %v2992, %v3115
        %v3245 = vmul.f32 %v2993, %v3120
        %v3246 = vmul.f32 %v2994, %v3125
        %v3247 = vmul.f32 %v2995, %v3130
        %v3248 = vmul.f32 %v2996, %v3135
        %v3249 = vmul.f32 %v2997, %v3140
        %v3250 = vmul.f32 %v2998, %v3145
        %v3251 = vmul.f32 %v2999, %v3150
        %v3252 = vmul.f32 %v3000, %v3155
        %v3253 = vmul.f32 %v3001, %v3160
        %v3254 = vmul.f32 %v3002, %v3165
        %v3255 = vmul.f32 %v3003, %v3170
        %v3256 = vmul.f32 %v3004, %v3175
        %v3257 = vmul.f32 %v3005, %v3180
        %v3258 = vmul.f32 %v3006, %v3185
        %v3259 = vmul.f32 %v3007, %v3190
        %v3260 = vmul.f32 %v3008, %v3195
        %v3261 = vmul.f32 %v3009, %v3200
        %v3262 = vmul.f32 %v3010, %v3205
        %v3263 = vmul.f32 %v3011, %v3210
        %v3264 = vmul.f32 %v3012, %v3215
        %v3265 = vmul.f32 %v3013, %v3220
        %v3266 = vmul.f32 %v3014, %v3225
        %v3267 = vmul.f32 %v3015, %v3230
        %v3268 = vadd.f32 %v3232, %v3233
        %v3269 = vadd.f32 %v3268, %v3234
        %v3270 = vadd.f32 %v3269, %v3235
        %v3271 = vadd.f32 %v3270, %v3236
        %v3272 = vadd.f32 %v3271, %v3237
        %v3273 = vadd.f32 %v3272, %v3238
        %v3274 = vadd.f32 %v3273, %v3239
        %v3275 = vadd.f32 %v3274, %v3240
        %v3276 = vadd.f32 %v3275, %v3241
        %v3277 = vadd.f32 %v3276, %v3242
        %v3278 = vadd.f32 %v3277, %v3243
        %v3279 = vadd.f32 %v3278, %v3244
        %v3280 = vadd.f32 %v3279, %v3245
        %v3281 = vadd.f32 %v3280, %v3246
        %v3282 = vadd.f32 %v3281, %v3247
        %v3283 = vadd.f32 %v3282, %v3248
        %v3284 = vadd.f32 %v3283, %v3249
        %v3285 = vadd.f32 %v3284, %v3250
        %v3286 = vadd.f32 %v3285, %v3251
        %v3287 = vadd.f32 %v3286, %v3252
        %v3288 = vadd.f32 %v3287, %v3253
        %v3289 = vadd.f32 %v3288, %v3254
        %v3290 = vadd.f32 %v3289, %v3255
        %v3291 = vadd.f32 %v3290, %v3256
        %v3292 = vadd.f32 %v3291, %v3257
        %v3293 = vadd.f32 %v3292, %v3258
        %v3294 = vadd.f32 %v3293, %v3259
        %v3295 = vadd.f32 %v3294, %v3260
        %v3296 = vadd.f32 %v3295, %v3261
        %v3297 = vadd.f32 %v3296, %v3262
        %v3298 = vadd.f32 %v3297, %v3263
        %v3299 = vadd.f32 %v3298, %v3264
        %v3300 = vadd.f32 %v3299, %v3265
        %v3301 = vadd.f32 %v3300, %v3266
        %v3302 = vadd.f32 %v3301, %v3267
        %v3303 = vrot.slane %v3302, 4
        %v3304 = vadd.f32 %v3302, %v3303
        %v3305 = vrot.slane %v3304, 2
        %v3306 = vadd.f32 %v3304, %v3305
        %v3307 = vrot.slane %v3306, 1
        %v3308 = vadd.f32 %v3306, %v3307
        %v3309 = vadd.f32 %v3308, 0.0
        %v3310 = vmul.f32 %v3309, 0.00390625
        %v3311 = vld [vmem:[%s4] sm:$0xff]
        %v3312 = vld [vmem:[%s4 + $0x8] sm:$0xff]
        %v3313 = vld [vmem:[%s4 + $0x10] sm:$0xff]
        %v3314 = vld [vmem:[%s4 + $0x18] sm:$0xff]
        %v3315 = vld [vmem:[%s4 + $0x20] sm:$0xff]
        %v3316 = vld [vmem:[%s4 + $0x28] sm:$0xff]
        %v3317 = vld [vmem:[%s4 + $0x30] sm:$0xff]
        %v3318 = vld [vmem:[%s4 + $0x38] sm:$0xff]
        %v3319 = vld [vmem:[%s4 + $0x40] sm:$0xff]
        %v3320 = vld [vmem:[%s4 + $0x48] sm:$0xff]
        %v3321 = vld [vmem:[%s4 + $0x50] sm:$0xff]
        %v3322 = vld [vmem:[%s4 + $0x58] sm:$0xff]
        %v3323 = vld [vmem:[%s4 + $0x60] sm:$0xff]
        %v3324 = vld [vmem:[%s4 + $0x68] sm:$0xff]
        %v3325 = vld [vmem:[%s4 + $0x70] sm:$0xff]
        %v3326 = vld [vmem:[%s4 + $0x78] sm:$0xff]
        %v3327 = vld [vmem:[%s5] sm:$0x1]
        %3328 = vmatpush.msra.mxu0 %v3326
        %3329 = vmatpush.msra.mxu0 %v3325
        %3330 = vmatpush.msra.mxu0 %v3324
        %3331 = vmatpush.msra.mxu0 %v3323
        %3332 = vmatpush.msra.mxu0 %v3322
        %3333 = vmatpush.msra.mxu0 %v3321
        %3334 = vmatpush.msra.mxu0 %v3320
        %3335 = vmatpush.msra.mxu0 %v3319
        %3336 = vmatpush.msra.mxu0 %v3318
        %3337 = vmatpush.msra.mxu0 %v3317
        %3338 = vmatpush.msra.mxu0 %v3316
        %3339 = vmatpush.msra.mxu0 %v3315
        %3340 = vmatpush.msra.mxu0 %v3314
        %3341 = vmatpush.msra.mxu0 %v3313
        %3342 = vmatpush.msra.mxu0 %v3312
        %3343 = vmatpush.msra.mxu0 %v3311
        %3344 = vmatmul.f32.gmra.mxu0 %v3310
        %v3345 = vpop.f32.mrf.mxu0
        %v3346 = vadd.f32 %v3327, %v3345
        %3347 = vdwg.mxu0
        %3348 = vst [vmem:[%s243] sm:$0x1] %v3346
        %s3349 = sand.u32 %s159, 1
        %s3350 = scalar_lea.sflag [#allocation3], %s3349
        %s3351 = sand.u32 %s159, 1
        %s3352 = scalar_lea.vmem [#allocation2], %s3351
        // Predicated region
        $region45: #{custom_model_forward.1} parent=43 // pred_check
          %p3353 = pneg %p169
        $region46: #{custom_model_forward.1} parent=43 // pred_check_branch
          %3355 = sbr.rel (%p3353) target = $region48
        $region47: #{custom_model_forward.1} parent=43 // pred_region
          %3357 = vsyncadd %s3350, 0
          %s3358 = scalar_lea.hbm %s6, %s20
          %s3360 = sshll.u32 %s3352, 4
          %s3361 = int_to_ptr.vmem [resolvable:$true] %s3360
          %s3362 = sshll.u32 %s3358, 4
          %s3363 = int_to_ptr.hbm [resolvable:$true] %s3362
          %3365 = dma.vmem_to_hbm [thread:$0]  %s3361, 16, %s3363, %s3350
        $region48: #{custom_model_forward.1} parent=43 // pred_fallthru
          _
      $region44: #{custom_model_forward.1} parent=5 // pred_fallthru
        _
      %p3366 = scmp.le.s32.totalorder 2, %s15
      // Predicated region
      $region49: #{custom_model_forward.1} parent=5 // pred_check
        %p3367 = pneg %p3366
      $region50: #{custom_model_forward.1} parent=5 // pred_check_branch
        %3369 = sbr.rel (%p3367) target = $region52
      $region51: #{custom_model_forward.1} parent=5 // pred_region
        %s3370 = ssub.s32 %s15, 2
        // Predicated region
        $region53: #{custom_model_forward.1} parent=51 // pred_check
          %p3371 = pneg %p175
        $region54: #{custom_model_forward.1} parent=51 // pred_check_branch
          %3373 = sbr.rel (%p3371) target = $region56
        $region55: #{custom_model_forward.1} parent=51 // pred_region
          %s3374 = sand.u32 %s160, 1
          %s3375 = scalar_lea.sflag [#allocation3], %s3374
          %s3376 = sand.u32 %s160, 1
          %s3377 = scalar_lea.vmem [#allocation2], %s3376
          %3379 = dma.done %s3375, 16
        $region56: #{custom_model_forward.1} parent=51 // pred_fallthru
          _
      $region52: #{custom_model_forward.1} parent=5 // pred_fallthru
        _
    $region6: #{custom_model_forward.1} parent=1 // loop_footer
      %s19 = sadd.s32 1, %s15
    $region7: #{custom_model_forward.1} parent=1 // loop_footer_branch
      %14 = sbr.rel target = $region3
    $region8: #{custom_model_forward.1} parent=1 // loop_exit
      _
    %3380 = vsyncpa [#allocation3], 1
    %s3381 = scalar_lea.sflag [#allocation3], 1
    %3382 = vsyncpa %s3381, 1

</llo_original>
